<compile_context>
chip_gen: v7x
topology: tpu7x:2x2x1
jax: 0.10.0
libtpu: 0.0.40
codegen_flags: <defaults>
</compile_context>

<pallas_src>
import math

import jax
import jax.numpy as jnp
import numpy as np
from jax.experimental import pallas as pl
from jax.experimental.pallas import tpu as pltpu


# ---------------------------------------------------------------------------
# Kernel
# ---------------------------------------------------------------------------
def customnet_kernel(x_ref,
                     w1_ref, b1_ref,
                     w2_ref, b2_ref,
                     w3_ref, b3_ref,
                     w4_ref, b4_ref,
                     wf_ref, bf_ref,
                     out_ref):
    def dense_relu(h, w_ref, b_ref):
        # bf16 x bf16 -> f32 accumulate (MXU), bias + ReLU in f32 (VPU),
        # cast back to bf16 for the next matmul's operand.
        a = jnp.dot(h, w_ref[...], preferred_element_type=jnp.float32)
        a = jnp.maximum(a + b_ref[...], 0.0)
        return a.astype(jnp.bfloat16)

    # Input arrives f32 (no wrapper cast pass); cast is a VPU op hidden
    # under the input DMA.
    h = x_ref[...].astype(jnp.bfloat16)          # (tile_n, 768) bf16
    h = dense_relu(h, w1_ref, b1_ref)            # (tile_n, 288)  == conv1 6x6x8
    h = dense_relu(h, w2_ref, b2_ref)            # (tile_n, 256)  == conv2 4x4x16
    h = dense_relu(h, w3_ref, b3_ref)            # (tile_n, 128)  == conv3 2x2x32
    h = dense_relu(h, w4_ref, b4_ref)            # (tile_n,  64)  == conv4 1x1x64

    # Linear(64 -> 1) against a lane-padded (64, 128) weight so both the matmul
    # output and the final store are lane-dense; column 0 holds the real logit.
    logits = jnp.dot(h, wf_ref[...],
                     preferred_element_type=jnp.float32) + bf_ref[...]  # (tile_n, 128)

    # Softmax over the original dim=1 (size 1): max == logit, so
    # exp(logit - max) / sum == exp(0) == 1.0 exactly (also exact in bf16).
    out_ref[...] = jnp.exp(logits - logits).astype(out_ref.dtype)


# ---------------------------------------------------------------------------
# Wrapper
# ---------------------------------------------------------------------------
def _round_up(n, m):
    return ((n + m - 1) // m) * m


def customnet_forward(x_nchw, dense_params, *, tile_n=1024):
    """x_nchw: (N, 12, 8, 8) float32 -> (N, 1) float32."""
    N = x_nchw.shape[0]

    # Native NCHW flattening (c*64 + h*8 + w): contiguous trailing-dim collapse,
    # no transpose / no cast / no pad pass over the batch in HBM.
    x = x_nchw.reshape(N, 12 * 8 * 8)

    # Keep >= 2 grid steps when the batch allows (both v7x TensorCores busy),
    # otherwise use the largest tile; rows stay a multiple of 16.
    tile_n = max(16, min(tile_n, _round_up(pl.cdiv(N, 2), 16)))
    grid = (pl.cdiv(N, tile_n),)   # partial last block is masked by Pallas

    (w1, b1, w2, b2, w3, b3, w4, b4, wf, bf) = dense_params
    weight_args = (w1, b1, w2, b2, w3, b3, w4, b4, wf, bf)

    def const_spec(a):
        # Full-array block, constant index map -> stays VMEM-resident across
        # all grid steps (no re-DMA).
        return pl.BlockSpec(a.shape, lambda i: (0,) * a.ndim)

    out = pl.pallas_call(
        customnet_kernel,
        out_shape=jax.ShapeDtypeStruct((N, 128), jnp.bfloat16),
        grid_spec=pltpu.PrefetchScalarGridSpec(
            num_scalar_prefetch=0,
            grid=grid,
            in_specs=[pl.BlockSpec((tile_n, 768), lambda i: (i, 0))]
                     + [const_spec(a) for a in weight_args],
            out_specs=pl.BlockSpec((tile_n, 128), lambda i: (i, 0)),
        ),
        compiler_params=pltpu.CompilerParams(
            dimension_semantics=("parallel",),
            vmem_limit_bytes=48 * 1024 * 1024,
        ),
    )(x, *weight_args)

    return out[:, :1].astype(jnp.float32)


# ---------------------------------------------------------------------------
# Parameters: PyTorch-style init, then lower convs to dense matmul weights
# ---------------------------------------------------------------------------
def _kaiming_uniform(key, shape, fan_in):
    bound = math.sqrt(2.0) * math.sqrt(3.0 / fan_in)   # gain=sqrt(2), a=0
    return jax.random.uniform(key, shape, jnp.float32, -bound, bound)


def make_params(key):
    ks = jax.random.split(key, 5)
    # conv weights stored as (KH, KW, Cin, Cout); linear stored as (64, 1)
    w1 = _kaiming_uniform(ks[0], (3, 3, 12, 8), fan_in=12 * 3 * 3)
    w2 = _kaiming_uniform(ks[1], (3, 3, 8, 16), fan_in=8 * 3 * 3)
    w3 = _kaiming_uniform(ks[2], (3, 3, 16, 32), fan_in=16 * 3 * 3)
    w4 = _kaiming_uniform(ks[3], (2, 2, 32, 64), fan_in=32 * 2 * 2)
    wf = _kaiming_uniform(ks[4], (64, 1), fan_in=64)
    b1 = jnp.full((8,), 0.01, jnp.float32)
    b2 = jnp.full((16,), 0.01, jnp.float32)
    b3 = jnp.full((32,), 0.01, jnp.float32)
    b4 = jnp.full((64,), 0.01, jnp.float32)
    bf = jnp.full((1,), 0.01, jnp.float32)
    return (w1, b1, w2, b2, w3, b3, w4, b4, wf, bf)


def _conv_as_dense(w, H, W, *, channels_first_rows=False):
    """Lower a valid stride-1 conv to a dense (H*W*Cin, Ho*Wo*Cout) matrix.

    Rows are indexed (h*W + w)*Cin + c (HWC-flat) by default, matching the
    column layout of the previous layer.  With channels_first_rows=True the
    rows are indexed c*H*W + h*W + w (NCHW-flat), so the first layer can
    consume x_nchw.reshape(N, C*H*W) directly (no input transpose pass).
    """
    w = np.asarray(w)
    KH, KW, Cin, Cout = w.shape
    Ho, Wo = H - KH + 1, W - KW + 1
    m = np.zeros((H * W * Cin, Ho * Wo * Cout), np.float32)
    for oh in range(Ho):
        for ow in range(Wo):
            col0 = (oh * Wo + ow) * Cout
            for kh in range(KH):
                for kw in range(KW):
                    ih, iw = oh + kh, ow + kw
                    if channels_first_rows:
                        for c in range(Cin):
                            row = c * H * W + ih * W + iw
                            m[row, col0:col0 + Cout] = w[kh, kw, c]
                    else:
                        row0 = (ih * W + iw) * Cin
                        m[row0:row0 + Cin, col0:col0 + Cout] = w[kh, kw]
    return m


def prepare_dense_params(params):
    (w1, b1, w2, b2, w3, b3, w4, b4, wf, bf) = params

    # Layer 1 rows permuted to native NCHW flat order (kills the input transpose).
    w1d = _conv_as_dense(w1, 8, 8, channels_first_rows=True)   # (768, 288)
    w2d = _conv_as_dense(w2, 6, 6)                             # (288, 256)
    w3d = _conv_as_dense(w3, 4, 4)                             # (256, 128)
    w4d = _conv_as_dense(w4, 2, 2)                             # (128,  64)

    b1d = np.tile(np.asarray(b1), 6 * 6)[None, :]   # (1, 288)
    b2d = np.tile(np.asarray(b2), 4 * 4)[None, :]   # (1, 256)
    b3d = np.tile(np.asarray(b3), 2 * 2)[None, :]   # (1, 128)
    b4d = np.asarray(b4)[None, :]                   # (1,  64)

    # Lane-pad the final Linear(64 -> 1) to 128 output lanes (col 0 is real).
    wfp = np.zeros((64, 128), np.float32)
    wfp[:, :1] = np.asarray(wf)
    bfp = np.zeros((1, 128), np.float32)
    bfp[0, 0] = float(np.asarray(bf)[0])

    bf16 = lambda a: jnp.asarray(a, jnp.bfloat16)
    f32 = lambda a: jnp.asarray(a, jnp.float32)
    return (bf16(w1d), f32(b1d),
            bf16(w2d), f32(b2d),
            bf16(w3d), f32(b3d),
            bf16(w4d), f32(b4d),
            bf16(wfp), f32(bfp))


if __name__ == "__main__":
    key = jax.random.PRNGKey(0)
    k_x, k_p = jax.random.split(key)

    # Chess-board-like input: batch=2, 12 planes, 8x8 board (NCHW, like PyTorch)
    x = jax.random.normal(k_x, (2, 12, 8, 8), jnp.float32)
    params = make_params(k_p)
    dense_params = prepare_dense_params(params)

    out = customnet_forward(x, dense_params)
    out = jax.block_until_ready(out)

    assert out.shape == (2, 1)
    # Softmax over a singleton dim is identically 1.0
    assert bool(jnp.allclose(out, 1.0, atol=1e-5))
    print("KERNEL_OK")
</pallas_src>

<mosaic_0001>
module attributes {stable_mosaic.version = 11 : i64} {
  func.func @customnet_kernel(%arg0: i32, %arg1: memref<16x768xf32, #tpu.memory_space<vmem>>, %arg2: memref<768x288xbf16, #tpu.memory_space<vmem>>, %arg3: memref<1x288xf32, #tpu.memory_space<vmem>>, %arg4: memref<288x256xbf16, #tpu.memory_space<vmem>>, %arg5: memref<1x256xf32, #tpu.memory_space<vmem>>, %arg6: memref<256x128xbf16, #tpu.memory_space<vmem>>, %arg7: memref<1x128xf32, #tpu.memory_space<vmem>>, %arg8: memref<128x64xbf16, #tpu.memory_space<vmem>>, %arg9: memref<1x64xf32, #tpu.memory_space<vmem>>, %arg10: memref<64x128xbf16, #tpu.memory_space<vmem>>, %arg11: memref<1x128xf32, #tpu.memory_space<vmem>>, %arg12: memref<16x128xbf16, #tpu.memory_space<vmem>>) attributes {dimension_semantics = [#tpu.dimension_semantics<parallel>], iteration_bounds = array<i64: 1>, scalar_prefetch = 0 : i64, scratch_operands = 0 : i64, tpu.core_type = #tpu.core_type<tc>, window_params = [{transform_indices = @transform_0, window_bounds = array<i64: 16, 768>}, {pipeline_mode = #tpu.pipeline_mode<synchronous>, transform_indices = @transform_1, window_bounds = array<i64: 768, 288>}, {pipeline_mode = #tpu.pipeline_mode<synchronous>, transform_indices = @transform_2, window_bounds = array<i64: 1, 288>}, {pipeline_mode = #tpu.pipeline_mode<synchronous>, transform_indices = @transform_3, window_bounds = array<i64: 288, 256>}, {pipeline_mode = #tpu.pipeline_mode<synchronous>, transform_indices = @transform_4, window_bounds = array<i64: 1, 256>}, {pipeline_mode = #tpu.pipeline_mode<synchronous>, transform_indices = @transform_5, window_bounds = array<i64: 256, 128>}, {pipeline_mode = #tpu.pipeline_mode<synchronous>, transform_indices = @transform_6, window_bounds = array<i64: 1, 128>}, {pipeline_mode = #tpu.pipeline_mode<synchronous>, transform_indices = @transform_7, window_bounds = array<i64: 128, 64>}, {pipeline_mode = #tpu.pipeline_mode<synchronous>, transform_indices = @transform_8, window_bounds = array<i64: 1, 64>}, {pipeline_mode = #tpu.pipeline_mode<synchronous>, transform_indices = @transform_9, window_bounds = array<i64: 64, 128>}, {pipeline_mode = #tpu.pipeline_mode<synchronous>, transform_indices = @transform_10, window_bounds = array<i64: 1, 128>}, {transform_indices = @transform_11, window_bounds = array<i64: 16, 128>}]} {
    %c0 = arith.constant 0 : index
    %c0_0 = arith.constant 0 : index
    %0 = vector.load %arg1[%c0, %c0_0] : memref<16x768xf32, #tpu.memory_space<vmem>>, vector<16x768xf32>
    %1 = arith.truncf %0 : vector<16x768xf32> to vector<16x768xbf16>
    %c0_1 = arith.constant 0 : index
    %c0_2 = arith.constant 0 : index
    %2 = vector.load %arg2[%c0_1, %c0_2] : memref<768x288xbf16, #tpu.memory_space<vmem>>, vector<768x288xbf16>
    %cst = arith.constant dense<0.000000e+00> : vector<16x288xf32>
    %3 = tpu.matmul %1, %2, %cst {dimension_numbers = #tpu.dot_dimension_numbers<[1], [0], [0], [1], [0, 0, 1, 1], [], []>} : vector<16x768xbf16>, vector<768x288xbf16>, vector<16x288xf32> -> vector<16x288xf32>
    %c0_3 = arith.constant 0 : index
    %c0_4 = arith.constant 0 : index
    %4 = vector.load %arg3[%c0_3, %c0_4] : memref<1x288xf32, #tpu.memory_space<vmem>>, vector<1x288xf32>
    %5 = vector.broadcast %4 : vector<1x288xf32> to vector<16x288xf32>
    %6 = arith.addf %3, %5 : vector<16x288xf32>
    %cst_5 = arith.constant 0.000000e+00 : f32
    %7 = vector.broadcast %cst_5 : f32 to vector<16x288xf32>
    %8 = arith.maximumf %6, %7 : vector<16x288xf32>
    %9 = arith.truncf %8 : vector<16x288xf32> to vector<16x288xbf16>
    %c0_6 = arith.constant 0 : index
    %c0_7 = arith.constant 0 : index
    %10 = vector.load %arg4[%c0_6, %c0_7] : memref<288x256xbf16, #tpu.memory_space<vmem>>, vector<288x256xbf16>
    %cst_8 = arith.constant dense<0.000000e+00> : vector<16x256xf32>
    %11 = tpu.matmul %9, %10, %cst_8 {dimension_numbers = #tpu.dot_dimension_numbers<[1], [0], [0], [1], [0, 0, 1, 1], [], []>} : vector<16x288xbf16>, vector<288x256xbf16>, vector<16x256xf32> -> vector<16x256xf32>
    %c0_9 = arith.constant 0 : index
    %c0_10 = arith.constant 0 : index
    %12 = vector.load %arg5[%c0_9, %c0_10] : memref<1x256xf32, #tpu.memory_space<vmem>>, vector<1x256xf32>
    %13 = vector.broadcast %12 : vector<1x256xf32> to vector<16x256xf32>
    %14 = arith.addf %11, %13 : vector<16x256xf32>
    %cst_11 = arith.constant 0.000000e+00 : f32
    %15 = vector.broadcast %cst_11 : f32 to vector<16x256xf32>
    %16 = arith.maximumf %14, %15 : vector<16x256xf32>
    %17 = arith.truncf %16 : vector<16x256xf32> to vector<16x256xbf16>
    %c0_12 = arith.constant 0 : index
    %c0_13 = arith.constant 0 : index
    %18 = vector.load %arg6[%c0_12, %c0_13] : memref<256x128xbf16, #tpu.memory_space<vmem>>, vector<256x128xbf16>
    %cst_14 = arith.constant dense<0.000000e+00> : vector<16x128xf32>
    %19 = tpu.matmul %17, %18, %cst_14 {dimension_numbers = #tpu.dot_dimension_numbers<[1], [0], [0], [1], [0, 0, 1, 1], [], []>} : vector<16x256xbf16>, vector<256x128xbf16>, vector<16x128xf32> -> vector<16x128xf32>
    %c0_15 = arith.constant 0 : index
    %c0_16 = arith.constant 0 : index
    %20 = vector.load %arg7[%c0_15, %c0_16] : memref<1x128xf32, #tpu.memory_space<vmem>>, vector<1x128xf32>
    %21 = vector.broadcast %20 : vector<1x128xf32> to vector<16x128xf32>
    %22 = arith.addf %19, %21 : vector<16x128xf32>
    %cst_17 = arith.constant 0.000000e+00 : f32
    %23 = vector.broadcast %cst_17 : f32 to vector<16x128xf32>
    %24 = arith.maximumf %22, %23 : vector<16x128xf32>
    %25 = arith.truncf %24 : vector<16x128xf32> to vector<16x128xbf16>
    %c0_18 = arith.constant 0 : index
    %c0_19 = arith.constant 0 : index
    %26 = vector.load %arg8[%c0_18, %c0_19] : memref<128x64xbf16, #tpu.memory_space<vmem>>, vector<128x64xbf16>
    %cst_20 = arith.constant dense<0.000000e+00> : vector<16x64xf32>
    %27 = tpu.matmul %25, %26, %cst_20 {dimension_numbers = #tpu.dot_dimension_numbers<[1], [0], [0], [1], [0, 0, 1, 1], [], []>} : vector<16x128xbf16>, vector<128x64xbf16>, vector<16x64xf32> -> vector<16x64xf32>
    %c0_21 = arith.constant 0 : index
    %c0_22 = arith.constant 0 : index
    %28 = vector.load %arg9[%c0_21, %c0_22] : memref<1x64xf32, #tpu.memory_space<vmem>>, vector<1x64xf32>
    %29 = vector.broadcast %28 : vector<1x64xf32> to vector<16x64xf32>
    %30 = arith.addf %27, %29 : vector<16x64xf32>
    %cst_23 = arith.constant 0.000000e+00 : f32
    %31 = vector.broadcast %cst_23 : f32 to vector<16x64xf32>
    %32 = arith.maximumf %30, %31 : vector<16x64xf32>
    %33 = arith.truncf %32 : vector<16x64xf32> to vector<16x64xbf16>
    %c0_24 = arith.constant 0 : index
    %c0_25 = arith.constant 0 : index
    %34 = vector.load %arg10[%c0_24, %c0_25] : memref<64x128xbf16, #tpu.memory_space<vmem>>, vector<64x128xbf16>
    %cst_26 = arith.constant dense<0.000000e+00> : vector<16x128xf32>
    %35 = tpu.matmul %33, %34, %cst_26 {dimension_numbers = #tpu.dot_dimension_numbers<[1], [0], [0], [1], [0, 0, 1, 1], [], []>} : vector<16x64xbf16>, vector<64x128xbf16>, vector<16x128xf32> -> vector<16x128xf32>
    %c0_27 = arith.constant 0 : index
    %c0_28 = arith.constant 0 : index
    %36 = vector.load %arg11[%c0_27, %c0_28] : memref<1x128xf32, #tpu.memory_space<vmem>>, vector<1x128xf32>
    %37 = vector.broadcast %36 : vector<1x128xf32> to vector<16x128xf32>
    %38 = arith.addf %35, %37 : vector<16x128xf32>
    %39 = arith.subf %38, %38 : vector<16x128xf32>
    %40 = math.exp %39 : vector<16x128xf32>
    %41 = arith.truncf %40 : vector<16x128xf32> to vector<16x128xbf16>
    %c0_29 = arith.constant 0 : index
    %c0_30 = arith.constant 0 : index
    %42 = vector.load %arg12[%c0_29, %c0_30] : memref<16x128xbf16, #tpu.memory_space<vmem>>, vector<16x128xbf16>
    tpu.vector_store %arg12[%c0_29, %c0_30], %41 {strides = array<i32>} : memref<16x128xbf16, #tpu.memory_space<vmem>>, vector<16x128xbf16>,
    return
  }
  func.func @transform_0(%arg0: i32) -> (i32, i32) {
    %c0_i32 = arith.constant 0 : i32
    %c0_i32_0 = arith.constant 0 : i32
    return %arg0, %c0_i32 : i32, i32
  }
  func.func @transform_1(%arg0: i32) -> (i32, i32) {
    %c0_i32 = arith.constant 0 : i32
    %c0_i32_0 = arith.constant 0 : i32
    %c0_i32_1 = arith.constant 0 : i32
    return %c0_i32, %c0_i32_0 : i32, i32
  }
  func.func @transform_2(%arg0: i32) -> (i32, i32) {
    %c0_i32 = arith.constant 0 : i32
    %c0_i32_0 = arith.constant 0 : i32
    %c0_i32_1 = arith.constant 0 : i32
    return %c0_i32, %c0_i32_0 : i32, i32
  }
  func.func @transform_3(%arg0: i32) -> (i32, i32) {
    %c0_i32 = arith.constant 0 : i32
    %c0_i32_0 = arith.constant 0 : i32
    %c0_i32_1 = arith.constant 0 : i32
    return %c0_i32, %c0_i32_0 : i32, i32
  }
  func.func @transform_4(%arg0: i32) -> (i32, i32) {
    %c0_i32 = arith.constant 0 : i32
    %c0_i32_0 = arith.constant 0 : i32
    %c0_i32_1 = arith.constant 0 : i32
    return %c0_i32, %c0_i32_0 : i32, i32
  }
  func.func @transform_5(%arg0: i32) -> (i32, i32) {
    %c0_i32 = arith.constant 0 : i32
    %c0_i32_0 = arith.constant 0 : i32
    %c0_i32_1 = arith.constant 0 : i32
    return %c0_i32, %c0_i32_0 : i32, i32
  }
  func.func @transform_6(%arg0: i32) -> (i32, i32) {
    %c0_i32 = arith.constant 0 : i32
    %c0_i32_0 = arith.constant 0 : i32
    %c0_i32_1 = arith.constant 0 : i32
    return %c0_i32, %c0_i32_0 : i32, i32
  }
  func.func @transform_7(%arg0: i32) -> (i32, i32) {
    %c0_i32 = arith.constant 0 : i32
    %c0_i32_0 = arith.constant 0 : i32
    %c0_i32_1 = arith.constant 0 : i32
    return %c0_i32, %c0_i32_0 : i32, i32
  }
  func.func @transform_8(%arg0: i32) -> (i32, i32) {
    %c0_i32 = arith.constant 0 : i32
    %c0_i32_0 = arith.constant 0 : i32
    %c0_i32_1 = arith.constant 0 : i32
    return %c0_i32, %c0_i32_0 : i32, i32
  }
  func.func @transform_9(%arg0: i32) -> (i32, i32) {
    %c0_i32 = arith.constant 0 : i32
    %c0_i32_0 = arith.constant 0 : i32
    %c0_i32_1 = arith.constant 0 : i32
    return %c0_i32, %c0_i32_0 : i32, i32
  }
  func.func @transform_10(%arg0: i32) -> (i32, i32) {
    %c0_i32 = arith.constant 0 : i32
    %c0_i32_0 = arith.constant 0 : i32
    %c0_i32_1 = arith.constant 0 : i32
    return %c0_i32, %c0_i32_0 : i32, i32
  }
  func.func @transform_11(%arg0: i32) -> (i32, i32) {
    %c0_i32 = arith.constant 0 : i32
    %c0_i32_0 = arith.constant 0 : i32
    return %arg0, %c0_i32 : i32, i32
  }
}

</mosaic_0001>

<llo_original>
// kernel: tpu_custom_call.1
$region0: #{tpu_custom_call.1}
  #allocation0 [shape = 'u32[]', space=smem, size = 0x4, offset = 0x4, fixed_abs, tag = 'smem constant byte address 0x4 - core index']
  #allocation1 [shape = 'u32[144,128]{1,0:T(1,128)}', space=vmem, size = 0x12000, scoped, tag = 'internal scratch']
  %s0 = inlined_call_operand.vmem [shape: f32[2,768], index: 0, kind: input, shape index: {}]
  %s1 = inlined_call_operand.vmem [shape: bf16[768,288], index: 1, kind: input, shape index: {}]
  %s2 = inlined_call_operand.vmem [shape: f32[1,288], index: 2, kind: input, shape index: {}]
  %s3 = inlined_call_operand.vmem [shape: bf16[288,256], index: 3, kind: input, shape index: {}]
  %s4 = inlined_call_operand.vmem [shape: f32[1,256], index: 4, kind: input, shape index: {}]
  %s5 = inlined_call_operand.vmem [shape: bf16[256,128], index: 5, kind: input, shape index: {}]
  %s6 = inlined_call_operand.vmem [shape: f32[1,128], index: 6, kind: input, shape index: {}]
  %s7 = inlined_call_operand.vmem [shape: bf16[128,64], index: 7, kind: input, shape index: {}]
  %s8 = inlined_call_operand.vmem [shape: f32[1,64], index: 8, kind: input, shape index: {}]
  %s9 = inlined_call_operand.vmem [shape: bf16[64,128], index: 9, kind: input, shape index: {}]
  %s10 = inlined_call_operand.vmem [shape: f32[1,128], index: 10, kind: input, shape index: {}]
  %s11 = inlined_call_operand.hbm [shape: bf16[2,128], index: 11, kind: output, shape index: {}]
  %s12 = sld [smem:[#allocation0]]
  $region54: #{tpu_custom_call.1} parent=0
    _
  %s14 = ssub.s32 1, %s12
  %s15 = scalar_select 0, %s14, %s12
  $region1: #{tpu_custom_call.1} parent=0
    #allocation2 [shape = 'u8[4096]{0}', space=vmem, size = 0x1000, scoped, tag = 'output window, operand 0, single buffered']
    #allocation3 [shape = 's32[1]{0}', space=sflag, size = 0x4, scoped, tag = 'scoped memory for tpu_custom_call.1']
    %16 = vsyncpa [#allocation3], 0
    // Predicated region
    $region2: #{tpu_custom_call.1} parent=1 // pred_check
      _
    $region3: #{tpu_custom_call.1} parent=1 // pred_check_branch
      %18 = sbr.rel (0) target = $region5
    $region4: #{tpu_custom_call.1} parent=1 // pred_region
      _
    $region5: #{tpu_custom_call.1} parent=1 // pred_fallthru
      _
    // Predicated region
    $region6: #{tpu_custom_call.1} parent=1 // pred_check
      _
    $region7: #{tpu_custom_call.1} parent=1 // pred_check_branch
      %20 = sbr.rel (0) target = $region9
    $region8: #{tpu_custom_call.1} parent=1 // pred_region
      _
    $region9: #{tpu_custom_call.1} parent=1 // pred_fallthru
      _
    // Predicated region
    $region10: #{tpu_custom_call.1} parent=1 // pred_check
      _
    $region11: #{tpu_custom_call.1} parent=1 // pred_check_branch
      %22 = sbr.rel (0) target = $region13
    $region12: #{tpu_custom_call.1} parent=1 // pred_region
      _
    $region13: #{tpu_custom_call.1} parent=1 // pred_fallthru
      _
    // Predicated region
    $region14: #{tpu_custom_call.1} parent=1 // pred_check
      _
    $region15: #{tpu_custom_call.1} parent=1 // pred_check_branch
      %24 = sbr.rel (0) target = $region17
    $region16: #{tpu_custom_call.1} parent=1 // pred_region
      _
    $region17: #{tpu_custom_call.1} parent=1 // pred_fallthru
      _
    // Predicated region
    $region18: #{tpu_custom_call.1} parent=1 // pred_check
      _
    $region19: #{tpu_custom_call.1} parent=1 // pred_check_branch
      %26 = sbr.rel (0) target = $region21
    $region20: #{tpu_custom_call.1} parent=1 // pred_region
      _
    $region21: #{tpu_custom_call.1} parent=1 // pred_fallthru
      _
    // Predicated region
    $region22: #{tpu_custom_call.1} parent=1 // pred_check
      _
    $region23: #{tpu_custom_call.1} parent=1 // pred_check_branch
      %28 = sbr.rel (0) target = $region25
    $region24: #{tpu_custom_call.1} parent=1 // pred_region
      _
    $region25: #{tpu_custom_call.1} parent=1 // pred_fallthru
      _
    // Predicated region
    $region26: #{tpu_custom_call.1} parent=1 // pred_check
      _
    $region27: #{tpu_custom_call.1} parent=1 // pred_check_branch
      %30 = sbr.rel (0) target = $region29
    $region28: #{tpu_custom_call.1} parent=1 // pred_region
      _
    $region29: #{tpu_custom_call.1} parent=1 // pred_fallthru
      _
    // Predicated region
    $region30: #{tpu_custom_call.1} parent=1 // pred_check
      _
    $region31: #{tpu_custom_call.1} parent=1 // pred_check_branch
      %32 = sbr.rel (0) target = $region33
    $region32: #{tpu_custom_call.1} parent=1 // pred_region
      _
    $region33: #{tpu_custom_call.1} parent=1 // pred_fallthru
      _
    // Predicated region
    $region34: #{tpu_custom_call.1} parent=1 // pred_check
      _
    $region35: #{tpu_custom_call.1} parent=1 // pred_check_branch
      %34 = sbr.rel (0) target = $region37
    $region36: #{tpu_custom_call.1} parent=1 // pred_region
      _
    $region37: #{tpu_custom_call.1} parent=1 // pred_fallthru
      _
    // Predicated region
    $region38: #{tpu_custom_call.1} parent=1 // pred_check
      _
    $region39: #{tpu_custom_call.1} parent=1 // pred_check_branch
      %36 = sbr.rel (0) target = $region41
    $region40: #{tpu_custom_call.1} parent=1 // pred_region
      _
    $region41: #{tpu_custom_call.1} parent=1 // pred_fallthru
      _
    // Predicated region
    $region42: #{tpu_custom_call.1} parent=1 // pred_check
      _
    $region43: #{tpu_custom_call.1} parent=1 // pred_check_branch
      %38 = sbr.rel (0) target = $region45
    $region44: #{tpu_custom_call.1} parent=1 // pred_region
      _
    $region45: #{tpu_custom_call.1} parent=1 // pred_fallthru
      _
    %v40 = vld [vmem:[%s0] sm:$0xff]
    %v41 = vld [vmem:[%s0 + $0x8] sm:$0xf]
    %v42 = vld [vmem:[%s0 + $0xc] sm:$0xff]
    %v43 = vld [vmem:[%s0 + $0x14] sm:$0xf]
    %v44 = vld [vmem:[%s0 + $0x18] sm:$0xff]
    %v45 = vld [vmem:[%s0 + $0x20] sm:$0xf]
    %v46 = vld [vmem:[%s0 + $0x24] sm:$0xff]
    %v47 = vld [vmem:[%s0 + $0x2c] sm:$0xf]
    %v48 = vld [vmem:[%s0 + $0x30] sm:$0xff]
    %v49 = vld [vmem:[%s0 + $0x38] sm:$0xf]
    %v50 = vld [vmem:[%s0 + $0x3c] sm:$0xff]
    %v51 = vld [vmem:[%s0 + $0x44] sm:$0xf]
    %v52 = vld [vmem:[%s0 + $0x48] sm:$0xff]
    %v53 = vld [vmem:[%s0 + $0x50] sm:$0xf]
    %v54 = vld [vmem:[%s0 + $0x54] sm:$0xff]
    %v55 = vld [vmem:[%s0 + $0x5c] sm:$0xf]
    %v72 = vcombine.low %v40, %v42
    %v73 = vcombine.high %v40, %v42
    %v74 = vcombine.low %v44, %v46
    %v75 = vcombine.high %v44, %v46
    %v77 = vunpack.c.l.s4 1983009808
    %v78 = vunpack.c.0.s8 %v77
    %v79 = vlaneseq
    %v80 = vshrl.u32 %v79, 7
    %v81 = vsub.s32 %v78, %v80
    %v82 = vrot.slane %v72, %v81
    %v84 = vunpack.c.l.s4 1983009808
    %v85 = vunpack.c.0.s8 %v84
    %v86 = vlaneseq
    %v87 = vshrl.u32 %v86, 7
    %v88 = vsub.s32 %v85, %v87
    %v89 = vrot.slane %v73, %v88
    %v91 = vunpack.c.l.s4 1983009808
    %v92 = vunpack.c.0.s8 %v91
    %v93 = vlaneseq
    %v94 = vshrl.u32 %v93, 7
    %v95 = vsub.s32 %v92, %v94
    %v96 = vrot.slane %v74, %v95
    %v98 = vunpack.c.l.s4 1983009808
    %v99 = vunpack.c.0.s8 %v98
    %v100 = vlaneseq
    %v101 = vshrl.u32 %v100, 7
    %v102 = vsub.s32 %v99, %v101
    %v103 = vrot.slane %v75, %v102
    %v104 = vcombine.low %v82, %v96
    %v105 = vcombine.high %v82, %v96
    %v106 = vcombine.low %v89, %v103
    %v107 = vcombine.high %v89, %v103
    %v108 = vcombine.low %v41, %v43
    %v109 = vcombine.low %v45, %v47
    %v111 = vunpack.c.l.s4 1983009808
    %v112 = vunpack.c.0.s8 %v111
    %v113 = vlaneseq
    %v114 = vshrl.u32 %v113, 7
    %v115 = vsub.s32 %v112, %v114
    %v116 = vrot.slane %v108, %v115
    %v118 = vunpack.c.l.s4 1983009808
    %v119 = vunpack.c.0.s8 %v118
    %v120 = vlaneseq
    %v121 = vshrl.u32 %v120, 7
    %v122 = vsub.s32 %v119, %v121
    %v123 = vrot.slane %v109, %v122
    %v124 = vcombine.low %v116, %v123
    %v125 = vcombine.high %v116, %v123
    %v126 = vcombine.low %v48, %v50
    %v127 = vcombine.high %v48, %v50
    %v128 = vcombine.low %v52, %v54
    %v129 = vcombine.high %v52, %v54
    %v131 = vunpack.c.l.s4 1983009808
    %v132 = vunpack.c.0.s8 %v131
    %v133 = vlaneseq
    %v134 = vshrl.u32 %v133, 7
    %v135 = vsub.s32 %v132, %v134
    %v136 = vrot.slane %v126, %v135
    %v138 = vunpack.c.l.s4 1983009808
    %v139 = vunpack.c.0.s8 %v138
    %v140 = vlaneseq
    %v141 = vshrl.u32 %v140, 7
    %v142 = vsub.s32 %v139, %v141
    %v143 = vrot.slane %v127, %v142
    %v145 = vunpack.c.l.s4 1983009808
    %v146 = vunpack.c.0.s8 %v145
    %v147 = vlaneseq
    %v148 = vshrl.u32 %v147, 7
    %v149 = vsub.s32 %v146, %v148
    %v150 = vrot.slane %v128, %v149
    %v152 = vunpack.c.l.s4 1983009808
    %v153 = vunpack.c.0.s8 %v152
    %v154 = vlaneseq
    %v155 = vshrl.u32 %v154, 7
    %v156 = vsub.s32 %v153, %v155
    %v157 = vrot.slane %v129, %v156
    %v158 = vcombine.low %v136, %v150
    %v159 = vcombine.high %v136, %v150
    %v160 = vcombine.low %v143, %v157
    %v161 = vcombine.high %v143, %v157
    %v162 = vcombine.low %v49, %v51
    %v163 = vcombine.low %v53, %v55
    %v165 = vunpack.c.l.s4 1983009808
    %v166 = vunpack.c.0.s8 %v165
    %v167 = vlaneseq
    %v168 = vshrl.u32 %v167, 7
    %v169 = vsub.s32 %v166, %v168
    %v170 = vrot.slane %v162, %v169
    %v172 = vunpack.c.l.s4 1983009808
    %v173 = vunpack.c.0.s8 %v172
    %v174 = vlaneseq
    %v175 = vshrl.u32 %v174, 7
    %v176 = vsub.s32 %v173, %v175
    %v177 = vrot.slane %v163, %v176
    %v178 = vcombine.low %v170, %v177
    %v179 = vcombine.high %v170, %v177
    %v192 = vpack.c.bf16 %v158, %v104
    %v193 = vpack.c.bf16 %v159, %v105
    %v194 = vpack.c.bf16 %v160, %v106
    %v195 = vpack.c.bf16 %v161, %v107
    %v196 = vpack.c.bf16 %v178, %v124
    %v197 = vpack.c.bf16 %v179, %v125
    %v198 = vld [vmem:[%s1] sm:$0xff]
    %v199 = vld [vmem:[%s1 + $0x8] sm:$0xf]
    %v200 = vld [vmem:[%s1 + $0xc] sm:$0xff]
    %v201 = vld [vmem:[%s1 + $0x14] sm:$0xf]
    %v202 = vld [vmem:[%s1 + $0x18] sm:$0xff]
    %v203 = vld [vmem:[%s1 + $0x20] sm:$0xf]
    %v204 = vld [vmem:[%s1 + $0x24] sm:$0xff]
    %v205 = vld [vmem:[%s1 + $0x2c] sm:$0xf]
    %v206 = vld [vmem:[%s1 + $0x30] sm:$0xff]
    %v207 = vld [vmem:[%s1 + $0x38] sm:$0xf]
    %v208 = vld [vmem:[%s1 + $0x3c] sm:$0xff]
    %v209 = vld [vmem:[%s1 + $0x44] sm:$0xf]
    %v210 = vld [vmem:[%s1 + $0x48] sm:$0xff]
    %v211 = vld [vmem:[%s1 + $0x50] sm:$0xf]
    %v212 = vld [vmem:[%s1 + $0x54] sm:$0xff]
    %v213 = vld [vmem:[%s1 + $0x5c] sm:$0xf]
    %v214 = vld [vmem:[%s1 + $0x60] sm:$0xff]
    %v215 = vld [vmem:[%s1 + $0x68] sm:$0xf]
    %v216 = vld [vmem:[%s1 + $0x6c] sm:$0xff]
    %v217 = vld [vmem:[%s1 + $0x74] sm:$0xf]
    %v218 = vld [vmem:[%s1 + $0x78] sm:$0xff]
    %v219 = vld [vmem:[%s1 + $0x80] sm:$0xf]
    %v220 = vld [vmem:[%s1 + $0x84] sm:$0xff]
    %v221 = vld [vmem:[%s1 + $0x8c] sm:$0xf]
    %v222 = vld [vmem:[%s1 + $0x90] sm:$0xff]
    %v223 = vld [vmem:[%s1 + $0x98] sm:$0xf]
    %v224 = vld [vmem:[%s1 + $0x9c] sm:$0xff]
    %v225 = vld [vmem:[%s1 + $0xa4] sm:$0xf]
    %v226 = vld [vmem:[%s1 + $0xa8] sm:$0xff]
    %v227 = vld [vmem:[%s1 + $0xb0] sm:$0xf]
    %v228 = vld [vmem:[%s1 + $0xb4] sm:$0xff]
    %v229 = vld [vmem:[%s1 + $0xbc] sm:$0xf]
    %v230 = vld [vmem:[%s1 + $0xc0] sm:$0xff]
    %v231 = vld [vmem:[%s1 + $0xc8] sm:$0xf]
    %v232 = vld [vmem:[%s1 + $0xcc] sm:$0xff]
    %v233 = vld [vmem:[%s1 + $0xd4] sm:$0xf]
    %v234 = vld [vmem:[%s1 + $0xd8] sm:$0xff]
    %v235 = vld [vmem:[%s1 + $0xe0] sm:$0xf]
    %v236 = vld [vmem:[%s1 + $0xe4] sm:$0xff]
    %v237 = vld [vmem:[%s1 + $0xec] sm:$0xf]
    %v238 = vld [vmem:[%s1 + $0xf0] sm:$0xff]
    %v239 = vld [vmem:[%s1 + $0xf8] sm:$0xf]
    %v240 = vld [vmem:[%s1 + $0xfc] sm:$0xff]
    %v241 = vld [vmem:[%s1 + $0x104] sm:$0xf]
    %v242 = vld [vmem:[%s1 + $0x108] sm:$0xff]
    %v243 = vld [vmem:[%s1 + $0x110] sm:$0xf]
    %v244 = vld [vmem:[%s1 + $0x114] sm:$0xff]
    %v245 = vld [vmem:[%s1 + $0x11c] sm:$0xf]
    %v246 = vld [vmem:[%s1 + $0x120] sm:$0xff]
    %v247 = vld [vmem:[%s1 + $0x128] sm:$0xf]
    %v248 = vld [vmem:[%s1 + $0x12c] sm:$0xff]
    %v249 = vld [vmem:[%s1 + $0x134] sm:$0xf]
    %v250 = vld [vmem:[%s1 + $0x138] sm:$0xff]
    %v251 = vld [vmem:[%s1 + $0x140] sm:$0xf]
    %v252 = vld [vmem:[%s1 + $0x144] sm:$0xff]
    %v253 = vld [vmem:[%s1 + $0x14c] sm:$0xf]
    %v254 = vld [vmem:[%s1 + $0x150] sm:$0xff]
    %v255 = vld [vmem:[%s1 + $0x158] sm:$0xf]
    %v256 = vld [vmem:[%s1 + $0x15c] sm:$0xff]
    %v257 = vld [vmem:[%s1 + $0x164] sm:$0xf]
    %v258 = vld [vmem:[%s1 + $0x168] sm:$0xff]
    %v259 = vld [vmem:[%s1 + $0x170] sm:$0xf]
    %v260 = vld [vmem:[%s1 + $0x174] sm:$0xff]
    %v261 = vld [vmem:[%s1 + $0x17c] sm:$0xf]
    %v262 = vld [vmem:[%s1 + $0x180] sm:$0xff]
    %v263 = vld [vmem:[%s1 + $0x188] sm:$0xf]
    %v264 = vld [vmem:[%s1 + $0x18c] sm:$0xff]
    %v265 = vld [vmem:[%s1 + $0x194] sm:$0xf]
    %v266 = vld [vmem:[%s1 + $0x198] sm:$0xff]
    %v267 = vld [vmem:[%s1 + $0x1a0] sm:$0xf]
    %v268 = vld [vmem:[%s1 + $0x1a4] sm:$0xff]
    %v269 = vld [vmem:[%s1 + $0x1ac] sm:$0xf]
    %v270 = vld [vmem:[%s1 + $0x1b0] sm:$0xff]
    %v271 = vld [vmem:[%s1 + $0x1b8] sm:$0xf]
    %v272 = vld [vmem:[%s1 + $0x1bc] sm:$0xff]
    %v273 = vld [vmem:[%s1 + $0x1c4] sm:$0xf]
    %v274 = vld [vmem:[%s1 + $0x1c8] sm:$0xff]
    %v275 = vld [vmem:[%s1 + $0x1d0] sm:$0xf]
    %v276 = vld [vmem:[%s1 + $0x1d4] sm:$0xff]
    %v277 = vld [vmem:[%s1 + $0x1dc] sm:$0xf]
    %v278 = vld [vmem:[%s1 + $0x1e0] sm:$0xff]
    %v279 = vld [vmem:[%s1 + $0x1e8] sm:$0xf]
    %v280 = vld [vmem:[%s1 + $0x1ec] sm:$0xff]
    %v281 = vld [vmem:[%s1 + $0x1f4] sm:$0xf]
    %v282 = vld [vmem:[%s1 + $0x1f8] sm:$0xff]
    %v283 = vld [vmem:[%s1 + $0x200] sm:$0xf]
    %v284 = vld [vmem:[%s1 + $0x204] sm:$0xff]
    %v285 = vld [vmem:[%s1 + $0x20c] sm:$0xf]
    %v286 = vld [vmem:[%s1 + $0x210] sm:$0xff]
    %v287 = vld [vmem:[%s1 + $0x218] sm:$0xf]
    %v288 = vld [vmem:[%s1 + $0x21c] sm:$0xff]
    %v289 = vld [vmem:[%s1 + $0x224] sm:$0xf]
    %v290 = vld [vmem:[%s1 + $0x228] sm:$0xff]
    %v291 = vld [vmem:[%s1 + $0x230] sm:$0xf]
    %v292 = vld [vmem:[%s1 + $0x234] sm:$0xff]
    %v293 = vld [vmem:[%s1 + $0x23c] sm:$0xf]
    %v294 = vld [vmem:[%s1 + $0x240] sm:$0xff]
    %v295 = vld [vmem:[%s1 + $0x248] sm:$0xf]
    %v296 = vld [vmem:[%s1 + $0x24c] sm:$0xff]
    %v297 = vld [vmem:[%s1 + $0x254] sm:$0xf]
    %v298 = vld [vmem:[%s1 + $0x258] sm:$0xff]
    %v299 = vld [vmem:[%s1 + $0x260] sm:$0xf]
    %v300 = vld [vmem:[%s1 + $0x264] sm:$0xff]
    %v301 = vld [vmem:[%s1 + $0x26c] sm:$0xf]
    %v302 = vld [vmem:[%s1 + $0x270] sm:$0xff]
    %v303 = vld [vmem:[%s1 + $0x278] sm:$0xf]
    %v304 = vld [vmem:[%s1 + $0x27c] sm:$0xff]
    %v305 = vld [vmem:[%s1 + $0x284] sm:$0xf]
    %v306 = vld [vmem:[%s1 + $0x288] sm:$0xff]
    %v307 = vld [vmem:[%s1 + $0x290] sm:$0xf]
    %v308 = vld [vmem:[%s1 + $0x294] sm:$0xff]
    %v309 = vld [vmem:[%s1 + $0x29c] sm:$0xf]
    %v310 = vld [vmem:[%s1 + $0x2a0] sm:$0xff]
    %v311 = vld [vmem:[%s1 + $0x2a8] sm:$0xf]
    %v312 = vld [vmem:[%s1 + $0x2ac] sm:$0xff]
    %v313 = vld [vmem:[%s1 + $0x2b4] sm:$0xf]
    %v314 = vld [vmem:[%s1 + $0x2b8] sm:$0xff]
    %v315 = vld [vmem:[%s1 + $0x2c0] sm:$0xf]
    %v316 = vld [vmem:[%s1 + $0x2c4] sm:$0xff]
    %v317 = vld [vmem:[%s1 + $0x2cc] sm:$0xf]
    %v318 = vld [vmem:[%s1 + $0x2d0] sm:$0xff]
    %v319 = vld [vmem:[%s1 + $0x2d8] sm:$0xf]
    %v320 = vld [vmem:[%s1 + $0x2dc] sm:$0xff]
    %v321 = vld [vmem:[%s1 + $0x2e4] sm:$0xf]
    %v322 = vld [vmem:[%s1 + $0x2e8] sm:$0xff]
    %v323 = vld [vmem:[%s1 + $0x2f0] sm:$0xf]
    %v324 = vld [vmem:[%s1 + $0x2f4] sm:$0xff]
    %v325 = vld [vmem:[%s1 + $0x2fc] sm:$0xf]
    %v326 = vld [vmem:[%s1 + $0x300] sm:$0xff]
    %v327 = vld [vmem:[%s1 + $0x308] sm:$0xf]
    %v328 = vld [vmem:[%s1 + $0x30c] sm:$0xff]
    %v329 = vld [vmem:[%s1 + $0x314] sm:$0xf]
    %v330 = vld [vmem:[%s1 + $0x318] sm:$0xff]
    %v331 = vld [vmem:[%s1 + $0x320] sm:$0xf]
    %v332 = vld [vmem:[%s1 + $0x324] sm:$0xff]
    %v333 = vld [vmem:[%s1 + $0x32c] sm:$0xf]
    %v334 = vld [vmem:[%s1 + $0x330] sm:$0xff]
    %v335 = vld [vmem:[%s1 + $0x338] sm:$0xf]
    %v336 = vld [vmem:[%s1 + $0x33c] sm:$0xff]
    %v337 = vld [vmem:[%s1 + $0x344] sm:$0xf]
    %v338 = vld [vmem:[%s1 + $0x348] sm:$0xff]
    %v339 = vld [vmem:[%s1 + $0x350] sm:$0xf]
    %v340 = vld [vmem:[%s1 + $0x354] sm:$0xff]
    %v341 = vld [vmem:[%s1 + $0x35c] sm:$0xf]
    %v342 = vld [vmem:[%s1 + $0x360] sm:$0xff]
    %v343 = vld [vmem:[%s1 + $0x368] sm:$0xf]
    %v344 = vld [vmem:[%s1 + $0x36c] sm:$0xff]
    %v345 = vld [vmem:[%s1 + $0x374] sm:$0xf]
    %v346 = vld [vmem:[%s1 + $0x378] sm:$0xff]
    %v347 = vld [vmem:[%s1 + $0x380] sm:$0xf]
    %v348 = vld [vmem:[%s1 + $0x384] sm:$0xff]
    %v349 = vld [vmem:[%s1 + $0x38c] sm:$0xf]
    %v350 = vld [vmem:[%s1 + $0x390] sm:$0xff]
    %v351 = vld [vmem:[%s1 + $0x398] sm:$0xf]
    %v352 = vld [vmem:[%s1 + $0x39c] sm:$0xff]
    %v353 = vld [vmem:[%s1 + $0x3a4] sm:$0xf]
    %v354 = vld [vmem:[%s1 + $0x3a8] sm:$0xff]
    %v355 = vld [vmem:[%s1 + $0x3b0] sm:$0xf]
    %v356 = vld [vmem:[%s1 + $0x3b4] sm:$0xff]
    %v357 = vld [vmem:[%s1 + $0x3bc] sm:$0xf]
    %v358 = vld [vmem:[%s1 + $0x3c0] sm:$0xff]
    %v359 = vld [vmem:[%s1 + $0x3c8] sm:$0xf]
    %v360 = vld [vmem:[%s1 + $0x3cc] sm:$0xff]
    %v361 = vld [vmem:[%s1 + $0x3d4] sm:$0xf]
    %v362 = vld [vmem:[%s1 + $0x3d8] sm:$0xff]
    %v363 = vld [vmem:[%s1 + $0x3e0] sm:$0xf]
    %v364 = vld [vmem:[%s1 + $0x3e4] sm:$0xff]
    %v365 = vld [vmem:[%s1 + $0x3ec] sm:$0xf]
    %v366 = vld [vmem:[%s1 + $0x3f0] sm:$0xff]
    %v367 = vld [vmem:[%s1 + $0x3f8] sm:$0xf]
    %v368 = vld [vmem:[%s1 + $0x3fc] sm:$0xff]
    %v369 = vld [vmem:[%s1 + $0x404] sm:$0xf]
    %v370 = vld [vmem:[%s1 + $0x408] sm:$0xff]
    %v371 = vld [vmem:[%s1 + $0x410] sm:$0xf]
    %v372 = vld [vmem:[%s1 + $0x414] sm:$0xff]
    %v373 = vld [vmem:[%s1 + $0x41c] sm:$0xf]
    %v374 = vld [vmem:[%s1 + $0x420] sm:$0xff]
    %v375 = vld [vmem:[%s1 + $0x428] sm:$0xf]
    %v376 = vld [vmem:[%s1 + $0x42c] sm:$0xff]
    %v377 = vld [vmem:[%s1 + $0x434] sm:$0xf]
    %v378 = vld [vmem:[%s1 + $0x438] sm:$0xff]
    %v379 = vld [vmem:[%s1 + $0x440] sm:$0xf]
    %v380 = vld [vmem:[%s1 + $0x444] sm:$0xff]
    %v381 = vld [vmem:[%s1 + $0x44c] sm:$0xf]
    %v382 = vld [vmem:[%s1 + $0x450] sm:$0xff]
    %v383 = vld [vmem:[%s1 + $0x458] sm:$0xf]
    %v384 = vld [vmem:[%s1 + $0x45c] sm:$0xff]
    %v385 = vld [vmem:[%s1 + $0x464] sm:$0xf]
    %v386 = vld [vmem:[%s1 + $0x468] sm:$0xff]
    %v387 = vld [vmem:[%s1 + $0x470] sm:$0xf]
    %v388 = vld [vmem:[%s1 + $0x474] sm:$0xff]
    %v389 = vld [vmem:[%s1 + $0x47c] sm:$0xf]
    %v390 = vld [vmem:[%s2] sm:$0x7]
    %v392 = vlaneseq
    %v393 = vshrl.u32 %v392, 7
    %v394 = vsub.s32 0, %v393
    %v395 = vrot.slane %v390, %v394
    %v396 = vlaneseq
    %v397 = vshrl.u32 %v396, 7
    %v398 = vsub.s32 1, %v397
    %v399 = vrot.slane %v390, %v398
    %v400 = vlaneseq
    %v401 = vshrl.u32 %v400, 7
    %v402 = vsub.s32 2, %v401
    %v403 = vrot.slane %v390, %v402
    %v599 = vunpack.c.l.b16 %v198
    %v600 = vunpack.c.h.b16 %v198
    %v601 = vunpack.c.l.b16 %v199
    %v602 = vunpack.c.l.b16 %v200
    %v603 = vunpack.c.h.b16 %v200
    %v604 = vunpack.c.l.b16 %v201
    %v605 = vunpack.c.l.b16 %v202
    %v606 = vunpack.c.h.b16 %v202
    %v607 = vunpack.c.l.b16 %v203
    %v608 = vunpack.c.l.b16 %v204
    %v609 = vunpack.c.h.b16 %v204
    %v610 = vunpack.c.l.b16 %v205
    %v611 = vunpack.c.l.b16 %v206
    %v612 = vunpack.c.h.b16 %v206
    %v613 = vunpack.c.l.b16 %v207
    %v614 = vunpack.c.l.b16 %v208
    %v615 = vunpack.c.h.b16 %v208
    %v616 = vunpack.c.l.b16 %v209
    %v617 = vunpack.c.l.b16 %v210
    %v618 = vunpack.c.h.b16 %v210
    %v619 = vunpack.c.l.b16 %v211
    %v620 = vunpack.c.l.b16 %v212
    %v621 = vunpack.c.h.b16 %v212
    %v622 = vunpack.c.l.b16 %v213
    %v623 = vunpack.c.l.b16 %v214
    %v624 = vunpack.c.h.b16 %v214
    %v625 = vunpack.c.l.b16 %v215
    %v626 = vunpack.c.l.b16 %v216
    %v627 = vunpack.c.h.b16 %v216
    %v628 = vunpack.c.l.b16 %v217
    %v629 = vunpack.c.l.b16 %v218
    %v630 = vunpack.c.h.b16 %v218
    %v631 = vunpack.c.l.b16 %v219
    %v632 = vunpack.c.l.b16 %v220
    %v633 = vunpack.c.h.b16 %v220
    %v634 = vunpack.c.l.b16 %v221
    %v635 = vunpack.c.l.b16 %v222
    %v636 = vunpack.c.h.b16 %v222
    %v637 = vunpack.c.l.b16 %v223
    %v638 = vunpack.c.l.b16 %v224
    %v639 = vunpack.c.h.b16 %v224
    %v640 = vunpack.c.l.b16 %v225
    %v641 = vunpack.c.l.b16 %v226
    %v642 = vunpack.c.h.b16 %v226
    %v643 = vunpack.c.l.b16 %v227
    %v644 = vunpack.c.l.b16 %v228
    %v645 = vunpack.c.h.b16 %v228
    %v646 = vunpack.c.l.b16 %v229
    %v647 = vunpack.c.l.b16 %v230
    %v648 = vunpack.c.h.b16 %v230
    %v649 = vunpack.c.l.b16 %v231
    %v650 = vunpack.c.l.b16 %v232
    %v651 = vunpack.c.h.b16 %v232
    %v652 = vunpack.c.l.b16 %v233
    %v653 = vunpack.c.l.b16 %v234
    %v654 = vunpack.c.h.b16 %v234
    %v655 = vunpack.c.l.b16 %v235
    %v656 = vunpack.c.l.b16 %v236
    %v657 = vunpack.c.h.b16 %v236
    %v658 = vunpack.c.l.b16 %v237
    %v659 = vunpack.c.l.b16 %v238
    %v660 = vunpack.c.h.b16 %v238
    %v661 = vunpack.c.l.b16 %v239
    %v662 = vunpack.c.l.b16 %v240
    %v663 = vunpack.c.h.b16 %v240
    %v664 = vunpack.c.l.b16 %v241
    %v665 = vunpack.c.l.b16 %v242
    %v666 = vunpack.c.h.b16 %v242
    %v667 = vunpack.c.l.b16 %v243
    %v668 = vunpack.c.l.b16 %v244
    %v669 = vunpack.c.h.b16 %v244
    %v670 = vunpack.c.l.b16 %v245
    %v671 = vunpack.c.l.b16 %v246
    %v672 = vunpack.c.h.b16 %v246
    %v673 = vunpack.c.l.b16 %v247
    %v674 = vunpack.c.l.b16 %v248
    %v675 = vunpack.c.h.b16 %v248
    %v676 = vunpack.c.l.b16 %v249
    %v677 = vunpack.c.l.b16 %v250
    %v678 = vunpack.c.h.b16 %v250
    %v679 = vunpack.c.l.b16 %v251
    %v680 = vunpack.c.l.b16 %v252
    %v681 = vunpack.c.h.b16 %v252
    %v682 = vunpack.c.l.b16 %v253
    %v683 = vunpack.c.l.b16 %v254
    %v684 = vunpack.c.h.b16 %v254
    %v685 = vunpack.c.l.b16 %v255
    %v686 = vunpack.c.l.b16 %v256
    %v687 = vunpack.c.h.b16 %v256
    %v688 = vunpack.c.l.b16 %v257
    %v689 = vunpack.c.l.b16 %v258
    %v690 = vunpack.c.h.b16 %v258
    %v691 = vunpack.c.l.b16 %v259
    %v692 = vunpack.c.l.b16 %v260
    %v693 = vunpack.c.h.b16 %v260
    %v694 = vunpack.c.l.b16 %v261
    %v695 = vunpack.c.l.b16 %v262
    %v696 = vunpack.c.h.b16 %v262
    %v697 = vunpack.c.l.b16 %v263
    %v698 = vunpack.c.l.b16 %v264
    %v699 = vunpack.c.h.b16 %v264
    %v700 = vunpack.c.l.b16 %v265
    %v701 = vunpack.c.l.b16 %v266
    %v702 = vunpack.c.h.b16 %v266
    %v703 = vunpack.c.l.b16 %v267
    %v704 = vunpack.c.l.b16 %v268
    %v705 = vunpack.c.h.b16 %v268
    %v706 = vunpack.c.l.b16 %v269
    %v707 = vunpack.c.l.b16 %v270
    %v708 = vunpack.c.h.b16 %v270
    %v709 = vunpack.c.l.b16 %v271
    %v710 = vunpack.c.l.b16 %v272
    %v711 = vunpack.c.h.b16 %v272
    %v712 = vunpack.c.l.b16 %v273
    %v713 = vunpack.c.l.b16 %v274
    %v714 = vunpack.c.h.b16 %v274
    %v715 = vunpack.c.l.b16 %v275
    %v716 = vunpack.c.l.b16 %v276
    %v717 = vunpack.c.h.b16 %v276
    %v718 = vunpack.c.l.b16 %v277
    %v719 = vunpack.c.l.b16 %v278
    %v720 = vunpack.c.h.b16 %v278
    %v721 = vunpack.c.l.b16 %v279
    %v722 = vunpack.c.l.b16 %v280
    %v723 = vunpack.c.h.b16 %v280
    %v724 = vunpack.c.l.b16 %v281
    %v725 = vunpack.c.l.b16 %v282
    %v726 = vunpack.c.h.b16 %v282
    %v727 = vunpack.c.l.b16 %v283
    %v728 = vunpack.c.l.b16 %v284
    %v729 = vunpack.c.h.b16 %v284
    %v730 = vunpack.c.l.b16 %v285
    %v731 = vunpack.c.l.b16 %v286
    %v732 = vunpack.c.h.b16 %v286
    %v733 = vunpack.c.l.b16 %v287
    %v734 = vunpack.c.l.b16 %v288
    %v735 = vunpack.c.h.b16 %v288
    %v736 = vunpack.c.l.b16 %v289
    %v737 = vunpack.c.l.b16 %v290
    %v738 = vunpack.c.h.b16 %v290
    %v739 = vunpack.c.l.b16 %v291
    %v740 = vunpack.c.l.b16 %v292
    %v741 = vunpack.c.h.b16 %v292
    %v742 = vunpack.c.l.b16 %v293
    %v743 = vunpack.c.l.b16 %v294
    %v744 = vunpack.c.h.b16 %v294
    %v745 = vunpack.c.l.b16 %v295
    %v746 = vunpack.c.l.b16 %v296
    %v747 = vunpack.c.h.b16 %v296
    %v748 = vunpack.c.l.b16 %v297
    %v749 = vunpack.c.l.b16 %v298
    %v750 = vunpack.c.h.b16 %v298
    %v751 = vunpack.c.l.b16 %v299
    %v752 = vunpack.c.l.b16 %v300
    %v753 = vunpack.c.h.b16 %v300
    %v754 = vunpack.c.l.b16 %v301
    %v755 = vunpack.c.l.b16 %v302
    %v756 = vunpack.c.h.b16 %v302
    %v757 = vunpack.c.l.b16 %v303
    %v758 = vunpack.c.l.b16 %v304
    %v759 = vunpack.c.h.b16 %v304
    %v760 = vunpack.c.l.b16 %v305
    %v761 = vunpack.c.l.b16 %v306
    %v762 = vunpack.c.h.b16 %v306
    %v763 = vunpack.c.l.b16 %v307
    %v764 = vunpack.c.l.b16 %v308
    %v765 = vunpack.c.h.b16 %v308
    %v766 = vunpack.c.l.b16 %v309
    %v767 = vunpack.c.l.b16 %v310
    %v768 = vunpack.c.h.b16 %v310
    %v769 = vunpack.c.l.b16 %v311
    %v770 = vunpack.c.l.b16 %v312
    %v771 = vunpack.c.h.b16 %v312
    %v772 = vunpack.c.l.b16 %v313
    %v773 = vunpack.c.l.b16 %v314
    %v774 = vunpack.c.h.b16 %v314
    %v775 = vunpack.c.l.b16 %v315
    %v776 = vunpack.c.l.b16 %v316
    %v777 = vunpack.c.h.b16 %v316
    %v778 = vunpack.c.l.b16 %v317
    %v779 = vunpack.c.l.b16 %v318
    %v780 = vunpack.c.h.b16 %v318
    %v781 = vunpack.c.l.b16 %v319
    %v782 = vunpack.c.l.b16 %v320
    %v783 = vunpack.c.h.b16 %v320
    %v784 = vunpack.c.l.b16 %v321
    %v785 = vunpack.c.l.b16 %v322
    %v786 = vunpack.c.h.b16 %v322
    %v787 = vunpack.c.l.b16 %v323
    %v788 = vunpack.c.l.b16 %v324
    %v789 = vunpack.c.h.b16 %v324
    %v790 = vunpack.c.l.b16 %v325
    %v791 = vunpack.c.l.b16 %v326
    %v792 = vunpack.c.h.b16 %v326
    %v793 = vunpack.c.l.b16 %v327
    %v794 = vunpack.c.l.b16 %v328
    %v795 = vunpack.c.h.b16 %v328
    %v796 = vunpack.c.l.b16 %v329
    %v797 = vunpack.c.l.b16 %v330
    %v798 = vunpack.c.h.b16 %v330
    %v799 = vunpack.c.l.b16 %v331
    %v800 = vunpack.c.l.b16 %v332
    %v801 = vunpack.c.h.b16 %v332
    %v802 = vunpack.c.l.b16 %v333
    %v803 = vunpack.c.l.b16 %v334
    %v804 = vunpack.c.h.b16 %v334
    %v805 = vunpack.c.l.b16 %v335
    %v806 = vunpack.c.l.b16 %v336
    %v807 = vunpack.c.h.b16 %v336
    %v808 = vunpack.c.l.b16 %v337
    %v809 = vunpack.c.l.b16 %v338
    %v810 = vunpack.c.h.b16 %v338
    %v811 = vunpack.c.l.b16 %v339
    %v812 = vunpack.c.l.b16 %v340
    %v813 = vunpack.c.h.b16 %v340
    %v814 = vunpack.c.l.b16 %v341
    %v815 = vunpack.c.l.b16 %v342
    %v816 = vunpack.c.h.b16 %v342
    %v817 = vunpack.c.l.b16 %v343
    %v818 = vunpack.c.l.b16 %v344
    %v819 = vunpack.c.h.b16 %v344
    %v820 = vunpack.c.l.b16 %v345
    %v821 = vunpack.c.l.b16 %v346
    %v822 = vunpack.c.h.b16 %v346
    %v823 = vunpack.c.l.b16 %v347
    %v824 = vunpack.c.l.b16 %v348
    %v825 = vunpack.c.h.b16 %v348
    %v826 = vunpack.c.l.b16 %v349
    %v827 = vunpack.c.l.b16 %v350
    %v828 = vunpack.c.h.b16 %v350
    %v829 = vunpack.c.l.b16 %v351
    %v830 = vunpack.c.l.b16 %v352
    %v831 = vunpack.c.h.b16 %v352
    %v832 = vunpack.c.l.b16 %v353
    %v833 = vunpack.c.l.b16 %v354
    %v834 = vunpack.c.h.b16 %v354
    %v835 = vunpack.c.l.b16 %v355
    %v836 = vunpack.c.l.b16 %v356
    %v837 = vunpack.c.h.b16 %v356
    %v838 = vunpack.c.l.b16 %v357
    %v839 = vunpack.c.l.b16 %v358
    %v840 = vunpack.c.h.b16 %v358
    %v841 = vunpack.c.l.b16 %v359
    %v842 = vunpack.c.l.b16 %v360
    %v843 = vunpack.c.h.b16 %v360
    %v844 = vunpack.c.l.b16 %v361
    %v845 = vunpack.c.l.b16 %v362
    %v846 = vunpack.c.h.b16 %v362
    %v847 = vunpack.c.l.b16 %v363
    %v848 = vunpack.c.l.b16 %v364
    %v849 = vunpack.c.h.b16 %v364
    %v850 = vunpack.c.l.b16 %v365
    %v851 = vunpack.c.l.b16 %v366
    %v852 = vunpack.c.h.b16 %v366
    %v853 = vunpack.c.l.b16 %v367
    %v854 = vunpack.c.l.b16 %v368
    %v855 = vunpack.c.h.b16 %v368
    %v856 = vunpack.c.l.b16 %v369
    %v857 = vunpack.c.l.b16 %v370
    %v858 = vunpack.c.h.b16 %v370
    %v859 = vunpack.c.l.b16 %v371
    %v860 = vunpack.c.l.b16 %v372
    %v861 = vunpack.c.h.b16 %v372
    %v862 = vunpack.c.l.b16 %v373
    %v863 = vunpack.c.l.b16 %v374
    %v864 = vunpack.c.h.b16 %v374
    %v865 = vunpack.c.l.b16 %v375
    %v866 = vunpack.c.l.b16 %v376
    %v867 = vunpack.c.h.b16 %v376
    %v868 = vunpack.c.l.b16 %v377
    %v869 = vunpack.c.l.b16 %v378
    %v870 = vunpack.c.h.b16 %v378
    %v871 = vunpack.c.l.b16 %v379
    %v872 = vunpack.c.l.b16 %v380
    %v873 = vunpack.c.h.b16 %v380
    %v874 = vunpack.c.l.b16 %v381
    %v875 = vunpack.c.l.b16 %v382
    %v876 = vunpack.c.h.b16 %v382
    %v877 = vunpack.c.l.b16 %v383
    %v878 = vunpack.c.l.b16 %v384
    %v879 = vunpack.c.h.b16 %v384
    %v880 = vunpack.c.l.b16 %v385
    %v881 = vunpack.c.l.b16 %v386
    %v882 = vunpack.c.h.b16 %v386
    %v883 = vunpack.c.l.b16 %v387
    %v884 = vunpack.c.l.b16 %v388
    %v885 = vunpack.c.h.b16 %v388
    %v886 = vunpack.c.l.b16 %v389
    %v887 = vpack.c.b16 %v602, %v599
    %v888 = vpack.c.b16 %v603, %v600
    %v889 = vpack.c.b16 %v604, %v601
    %v890 = vpack.c.b16 %v608, %v605
    %v891 = vpack.c.b16 %v609, %v606
    %v892 = vpack.c.b16 %v610, %v607
    %v893 = vpack.c.b16 %v614, %v611
    %v894 = vpack.c.b16 %v615, %v612
    %v895 = vpack.c.b16 %v616, %v613
    %v896 = vpack.c.b16 %v620, %v617
    %v897 = vpack.c.b16 %v621, %v618
    %v898 = vpack.c.b16 %v622, %v619
    %v899 = vpack.c.b16 %v626, %v623
    %v900 = vpack.c.b16 %v627, %v624
    %v901 = vpack.c.b16 %v628, %v625
    %v902 = vpack.c.b16 %v632, %v629
    %v903 = vpack.c.b16 %v633, %v630
    %v904 = vpack.c.b16 %v634, %v631
    %v905 = vpack.c.b16 %v638, %v635
    %v906 = vpack.c.b16 %v639, %v636
    %v907 = vpack.c.b16 %v640, %v637
    %v908 = vpack.c.b16 %v644, %v641
    %v909 = vpack.c.b16 %v645, %v642
    %v910 = vpack.c.b16 %v646, %v643
    %v911 = vpack.c.b16 %v650, %v647
    %v912 = vpack.c.b16 %v651, %v648
    %v913 = vpack.c.b16 %v652, %v649
    %v914 = vpack.c.b16 %v656, %v653
    %v915 = vpack.c.b16 %v657, %v654
    %v916 = vpack.c.b16 %v658, %v655
    %v917 = vpack.c.b16 %v662, %v659
    %v918 = vpack.c.b16 %v663, %v660
    %v919 = vpack.c.b16 %v664, %v661
    %v920 = vpack.c.b16 %v668, %v665
    %v921 = vpack.c.b16 %v669, %v666
    %v922 = vpack.c.b16 %v670, %v667
    %v923 = vpack.c.b16 %v674, %v671
    %v924 = vpack.c.b16 %v675, %v672
    %v925 = vpack.c.b16 %v676, %v673
    %v926 = vpack.c.b16 %v680, %v677
    %v927 = vpack.c.b16 %v681, %v678
    %v928 = vpack.c.b16 %v682, %v679
    %v929 = vpack.c.b16 %v686, %v683
    %v930 = vpack.c.b16 %v687, %v684
    %v931 = vpack.c.b16 %v688, %v685
    %v932 = vpack.c.b16 %v692, %v689
    %v933 = vpack.c.b16 %v693, %v690
    %v934 = vpack.c.b16 %v694, %v691
    %v935 = vpack.c.b16 %v698, %v695
    %v936 = vpack.c.b16 %v699, %v696
    %v937 = vpack.c.b16 %v700, %v697
    %v938 = vpack.c.b16 %v704, %v701
    %v939 = vpack.c.b16 %v705, %v702
    %v940 = vpack.c.b16 %v706, %v703
    %v941 = vpack.c.b16 %v710, %v707
    %v942 = vpack.c.b16 %v711, %v708
    %v943 = vpack.c.b16 %v712, %v709
    %v944 = vpack.c.b16 %v716, %v713
    %v945 = vpack.c.b16 %v717, %v714
    %v946 = vpack.c.b16 %v718, %v715
    %v947 = vpack.c.b16 %v722, %v719
    %v948 = vpack.c.b16 %v723, %v720
    %v949 = vpack.c.b16 %v724, %v721
    %v950 = vpack.c.b16 %v728, %v725
    %v951 = vpack.c.b16 %v729, %v726
    %v952 = vpack.c.b16 %v730, %v727
    %v953 = vpack.c.b16 %v734, %v731
    %v954 = vpack.c.b16 %v735, %v732
    %v955 = vpack.c.b16 %v736, %v733
    %v956 = vpack.c.b16 %v740, %v737
    %v957 = vpack.c.b16 %v741, %v738
    %v958 = vpack.c.b16 %v742, %v739
    %v959 = vpack.c.b16 %v746, %v743
    %v960 = vpack.c.b16 %v747, %v744
    %v961 = vpack.c.b16 %v748, %v745
    %v962 = vpack.c.b16 %v752, %v749
    %v963 = vpack.c.b16 %v753, %v750
    %v964 = vpack.c.b16 %v754, %v751
    %v965 = vpack.c.b16 %v758, %v755
    %v966 = vpack.c.b16 %v759, %v756
    %v967 = vpack.c.b16 %v760, %v757
    %v968 = vpack.c.b16 %v764, %v761
    %v969 = vpack.c.b16 %v765, %v762
    %v970 = vpack.c.b16 %v766, %v763
    %v971 = vpack.c.b16 %v770, %v767
    %v972 = vpack.c.b16 %v771, %v768
    %v973 = vpack.c.b16 %v772, %v769
    %v974 = vpack.c.b16 %v776, %v773
    %v975 = vpack.c.b16 %v777, %v774
    %v976 = vpack.c.b16 %v778, %v775
    %v977 = vpack.c.b16 %v782, %v779
    %v978 = vpack.c.b16 %v783, %v780
    %v979 = vpack.c.b16 %v784, %v781
    %v980 = vpack.c.b16 %v788, %v785
    %v981 = vpack.c.b16 %v789, %v786
    %v982 = vpack.c.b16 %v790, %v787
    %v983 = vpack.c.b16 %v794, %v791
    %v984 = vpack.c.b16 %v795, %v792
    %v985 = vpack.c.b16 %v796, %v793
    %v986 = vpack.c.b16 %v800, %v797
    %v987 = vpack.c.b16 %v801, %v798
    %v988 = vpack.c.b16 %v802, %v799
    %v989 = vpack.c.b16 %v806, %v803
    %v990 = vpack.c.b16 %v807, %v804
    %v991 = vpack.c.b16 %v808, %v805
    %v992 = vpack.c.b16 %v812, %v809
    %v993 = vpack.c.b16 %v813, %v810
    %v994 = vpack.c.b16 %v814, %v811
    %v995 = vpack.c.b16 %v818, %v815
    %v996 = vpack.c.b16 %v819, %v816
    %v997 = vpack.c.b16 %v820, %v817
    %v998 = vpack.c.b16 %v824, %v821
    %v999 = vpack.c.b16 %v825, %v822
    %v1000 = vpack.c.b16 %v826, %v823
    %v1001 = vpack.c.b16 %v830, %v827
    %v1002 = vpack.c.b16 %v831, %v828
    %v1003 = vpack.c.b16 %v832, %v829
    %v1004 = vpack.c.b16 %v836, %v833
    %v1005 = vpack.c.b16 %v837, %v834
    %v1006 = vpack.c.b16 %v838, %v835
    %v1007 = vpack.c.b16 %v842, %v839
    %v1008 = vpack.c.b16 %v843, %v840
    %v1009 = vpack.c.b16 %v844, %v841
    %v1010 = vpack.c.b16 %v848, %v845
    %v1011 = vpack.c.b16 %v849, %v846
    %v1012 = vpack.c.b16 %v850, %v847
    %v1013 = vpack.c.b16 %v854, %v851
    %v1014 = vpack.c.b16 %v855, %v852
    %v1015 = vpack.c.b16 %v856, %v853
    %v1016 = vpack.c.b16 %v860, %v857
    %v1017 = vpack.c.b16 %v861, %v858
    %v1018 = vpack.c.b16 %v862, %v859
    %v1019 = vpack.c.b16 %v866, %v863
    %v1020 = vpack.c.b16 %v867, %v864
    %v1021 = vpack.c.b16 %v868, %v865
    %v1022 = vpack.c.b16 %v872, %v869
    %v1023 = vpack.c.b16 %v873, %v870
    %v1024 = vpack.c.b16 %v874, %v871
    %v1025 = vpack.c.b16 %v878, %v875
    %v1026 = vpack.c.b16 %v879, %v876
    %v1027 = vpack.c.b16 %v880, %v877
    %v1028 = vpack.c.b16 %v884, %v881
    %v1029 = vpack.c.b16 %v885, %v882
    %v1030 = vpack.c.b16 %v886, %v883
    %1175 = vmatprep.subr.bf16.mxu0 %v888
    %1176 = vmatpush1.bf16.msra.mxu0 %v887
    %1177 = vmatprep.subr.bf16.mxu0 %v891
    %1178 = vmatpush1.bf16.msra.mxu0 %v890
    %1179 = vmatprep.subr.bf16.mxu0 %v894
    %1180 = vmatpush1.bf16.msra.mxu0 %v893
    %1181 = vmatprep.subr.bf16.mxu0 %v897
    %1182 = vmatpush1.bf16.msra.mxu0 %v896
    %1183 = vmatprep.subr.bf16.mxu0 %v900
    %1184 = vmatpush1.bf16.msra.mxu0 %v899
    %1185 = vmatprep.subr.bf16.mxu0 %v903
    %1186 = vmatpush1.bf16.msra.mxu0 %v902
    %1187 = vmatprep.subr.bf16.mxu0 %v906
    %1188 = vmatpush1.bf16.msra.mxu0 %v905
    %1189 = vmatprep.subr.bf16.mxu0 %v909
    %1190 = vmatpush1.bf16.msra.mxu0 %v908
    %1191 = vmatprep.subr.bf16.mxu0 %v912
    %1192 = vmatpush1.bf16.msra.mxu0 %v911
    %1193 = vmatprep.subr.bf16.mxu0 %v915
    %1194 = vmatpush1.bf16.msra.mxu0 %v914
    %1195 = vmatprep.subr.bf16.mxu0 %v918
    %1196 = vmatpush1.bf16.msra.mxu0 %v917
    %1197 = vmatprep.subr.bf16.mxu0 %v921
    %1198 = vmatpush1.bf16.msra.mxu0 %v920
    %1199 = vmatprep.subr.bf16.mxu0 %v924
    %1200 = vmatpush1.bf16.msra.mxu0 %v923
    %1201 = vmatprep.subr.bf16.mxu0 %v927
    %1202 = vmatpush1.bf16.msra.mxu0 %v926
    %1203 = vmatprep.subr.bf16.mxu0 %v930
    %1204 = vmatpush1.bf16.msra.mxu0 %v929
    %1205 = vmatprep.subr.bf16.mxu0 %v933
    %1206 = vmatpush1.bf16.msra.mxu0 %v932
    %1207 = vmatprep.mubr.bf16.mxu0 %v193
    %1208 = vmatmul.mubr.bf16.gmra.mrb[0].mxu0 %v192
    %v1209 = vpop.f32.mrb[0].mxu0
    %v1210 = vadd.f32 %v395, %v1209
    %v1211 = vpop.f32.mrb[0].mxu0
    %v1212 = vadd.f32 %v399, %v1211
    %v1213 = vpop.f32.mrb[0].mxu0
    %v1214 = vadd.f32 %v395, %v1213
    %v1215 = vpop.f32.mrb[0].mxu0
    %v1216 = vadd.f32 %v399, %v1215
    %1217 = vdwg.mxu0
    %1218 = vmatprep.subr.bf16.mxu0 %v936
    %1219 = vmatpush1.bf16.msra.mxu0 %v935
    %1220 = vmatprep.subr.bf16.mxu0 %v939
    %1221 = vmatpush1.bf16.msra.mxu0 %v938
    %1222 = vmatprep.subr.bf16.mxu0 %v942
    %1223 = vmatpush1.bf16.msra.mxu0 %v941
    %1224 = vmatprep.subr.bf16.mxu0 %v945
    %1225 = vmatpush1.bf16.msra.mxu0 %v944
    %1226 = vmatprep.subr.bf16.mxu0 %v948
    %1227 = vmatpush1.bf16.msra.mxu0 %v947
    %1228 = vmatprep.subr.bf16.mxu0 %v951
    %1229 = vmatpush1.bf16.msra.mxu0 %v950
    %1230 = vmatprep.subr.bf16.mxu0 %v954
    %1231 = vmatpush1.bf16.msra.mxu0 %v953
    %1232 = vmatprep.subr.bf16.mxu0 %v957
    %1233 = vmatpush1.bf16.msra.mxu0 %v956
    %1234 = vmatprep.subr.bf16.mxu0 %v960
    %1235 = vmatpush1.bf16.msra.mxu0 %v959
    %1236 = vmatprep.subr.bf16.mxu0 %v963
    %1237 = vmatpush1.bf16.msra.mxu0 %v962
    %1238 = vmatprep.subr.bf16.mxu0 %v966
    %1239 = vmatpush1.bf16.msra.mxu0 %v965
    %1240 = vmatprep.subr.bf16.mxu0 %v969
    %1241 = vmatpush1.bf16.msra.mxu0 %v968
    %1242 = vmatprep.subr.bf16.mxu0 %v972
    %1243 = vmatpush1.bf16.msra.mxu0 %v971
    %1244 = vmatprep.subr.bf16.mxu0 %v975
    %1245 = vmatpush1.bf16.msra.mxu0 %v974
    %1246 = vmatprep.subr.bf16.mxu0 %v978
    %1247 = vmatpush1.bf16.msra.mxu0 %v977
    %1248 = vmatprep.subr.bf16.mxu0 %v981
    %1249 = vmatpush1.bf16.msra.mxu0 %v980
    %1250 = vmatprep.mubr.bf16.mxu0 %v195
    %1251 = vmatmul.mubr.bf16.gmra.mrb[0].mxu0 %v194
    %v1252 = vpop.f32.mrb[0].mxu0
    %v1253 = vadd.f32 %v1210, %v1252
    %v1254 = vpop.f32.mrb[0].mxu0
    %v1255 = vadd.f32 %v1212, %v1254
    %v1256 = vpop.f32.mrb[0].mxu0
    %v1257 = vadd.f32 %v1214, %v1256
    %v1258 = vpop.f32.mrb[0].mxu0
    %v1259 = vadd.f32 %v1216, %v1258
    %1260 = vdwg.mxu0
    %1261 = vmatprep.subr.bf16.mxu0 %v984
    %1262 = vmatpush1.bf16.msra.mxu0 %v983
    %1263 = vmatprep.subr.bf16.mxu0 %v987
    %1264 = vmatpush1.bf16.msra.mxu0 %v986
    %1265 = vmatprep.subr.bf16.mxu0 %v990
    %1266 = vmatpush1.bf16.msra.mxu0 %v989
    %1267 = vmatprep.subr.bf16.mxu0 %v993
    %1268 = vmatpush1.bf16.msra.mxu0 %v992
    %1269 = vmatprep.subr.bf16.mxu0 %v996
    %1270 = vmatpush1.bf16.msra.mxu0 %v995
    %1271 = vmatprep.subr.bf16.mxu0 %v999
    %1272 = vmatpush1.bf16.msra.mxu0 %v998
    %1273 = vmatprep.subr.bf16.mxu0 %v1002
    %1274 = vmatpush1.bf16.msra.mxu0 %v1001
    %1275 = vmatprep.subr.bf16.mxu0 %v1005
    %1276 = vmatpush1.bf16.msra.mxu0 %v1004
    %1277 = vmatprep.subr.bf16.mxu0 %v1008
    %1278 = vmatpush1.bf16.msra.mxu0 %v1007
    %1279 = vmatprep.subr.bf16.mxu0 %v1011
    %1280 = vmatpush1.bf16.msra.mxu0 %v1010
    %1281 = vmatprep.subr.bf16.mxu0 %v1014
    %1282 = vmatpush1.bf16.msra.mxu0 %v1013
    %1283 = vmatprep.subr.bf16.mxu0 %v1017
    %1284 = vmatpush1.bf16.msra.mxu0 %v1016
    %1285 = vmatprep.subr.bf16.mxu0 %v1020
    %1286 = vmatpush1.bf16.msra.mxu0 %v1019
    %1287 = vmatprep.subr.bf16.mxu0 %v1023
    %1288 = vmatpush1.bf16.msra.mxu0 %v1022
    %1289 = vmatprep.subr.bf16.mxu0 %v1026
    %1290 = vmatpush1.bf16.msra.mxu0 %v1025
    %1291 = vmatprep.subr.bf16.mxu0 %v1029
    %1292 = vmatpush1.bf16.msra.mxu0 %v1028
    %1293 = vmatprep.mubr.bf16.mxu0 %v197
    %1294 = vmatmul.mubr.bf16.gmra.mrb[0].mxu0 %v196
    %v1295 = vpop.f32.mrb[0].mxu0
    %v1296 = vadd.f32 %v1253, %v1295
    %v1297 = vpop.f32.mrb[0].mxu0
    %v1298 = vadd.f32 %v1255, %v1297
    %v1299 = vpop.f32.mrb[0].mxu0
    %v1300 = vadd.f32 %v1257, %v1299
    %v1301 = vpop.f32.mrb[0].mxu0
    %v1302 = vadd.f32 %v1259, %v1301
    %1303 = vdwg.mxu0
    %1304 = vmatprep.subr.bf16.mxu0 0
    %1305 = vmatpush1.bf16.msra.mxu0 %v889
    %1306 = vmatprep.subr.bf16.mxu0 0
    %1307 = vmatpush1.bf16.msra.mxu0 %v892
    %1308 = vmatprep.subr.bf16.mxu0 0
    %1309 = vmatpush1.bf16.msra.mxu0 %v895
    %1310 = vmatprep.subr.bf16.mxu0 0
    %1311 = vmatpush1.bf16.msra.mxu0 %v898
    %1312 = vmatprep.subr.bf16.mxu0 0
    %1313 = vmatpush1.bf16.msra.mxu0 %v901
    %1314 = vmatprep.subr.bf16.mxu0 0
    %1315 = vmatpush1.bf16.msra.mxu0 %v904
    %1316 = vmatprep.subr.bf16.mxu0 0
    %1317 = vmatpush1.bf16.msra.mxu0 %v907
    %1318 = vmatprep.subr.bf16.mxu0 0
    %1319 = vmatpush1.bf16.msra.mxu0 %v910
    %1320 = vmatprep.subr.bf16.mxu0 0
    %1321 = vmatpush1.bf16.msra.mxu0 %v913
    %1322 = vmatprep.subr.bf16.mxu0 0
    %1323 = vmatpush1.bf16.msra.mxu0 %v916
    %1324 = vmatprep.subr.bf16.mxu0 0
    %1325 = vmatpush1.bf16.msra.mxu0 %v919
    %1326 = vmatprep.subr.bf16.mxu0 0
    %1327 = vmatpush1.bf16.msra.mxu0 %v922
    %1328 = vmatprep.subr.bf16.mxu0 0
    %1329 = vmatpush1.bf16.msra.mxu0 %v925
    %1330 = vmatprep.subr.bf16.mxu0 0
    %1331 = vmatpush1.bf16.msra.mxu0 %v928
    %1332 = vmatprep.subr.bf16.mxu0 0
    %1333 = vmatpush1.bf16.msra.mxu0 %v931
    %1334 = vmatprep.subr.bf16.mxu0 0
    %1335 = vmatpush1.bf16.msra.mxu0 %v934
    %1336 = vmatprep.mubr.bf16.mxu0 %v193
    %1337 = vmatmul.mubr.bf16.gmra.mrb[0].mxu0 %v192
    %v1338 = vpop.f32.mrb[0].mxu0
    %v1339 = vadd.f32 %v403, %v1338
    %v1340 = vpop.f32.mrb[0].mxu0
    %v1341 = vpop.f32.mrb[0].mxu0
    %v1342 = vadd.f32 %v403, %v1341
    %v1343 = vpop.f32.mrb[0].mxu0
    %1344 = vdwg.mxu0
    %1345 = vmatprep.subr.bf16.mxu0 0
    %1346 = vmatpush1.bf16.msra.mxu0 %v937
    %1347 = vmatprep.subr.bf16.mxu0 0
    %1348 = vmatpush1.bf16.msra.mxu0 %v940
    %1349 = vmatprep.subr.bf16.mxu0 0
    %1350 = vmatpush1.bf16.msra.mxu0 %v943
    %1351 = vmatprep.subr.bf16.mxu0 0
    %1352 = vmatpush1.bf16.msra.mxu0 %v946
    %1353 = vmatprep.subr.bf16.mxu0 0
    %1354 = vmatpush1.bf16.msra.mxu0 %v949
    %1355 = vmatprep.subr.bf16.mxu0 0
    %1356 = vmatpush1.bf16.msra.mxu0 %v952
    %1357 = vmatprep.subr.bf16.mxu0 0
    %1358 = vmatpush1.bf16.msra.mxu0 %v955
    %1359 = vmatprep.subr.bf16.mxu0 0
    %1360 = vmatpush1.bf16.msra.mxu0 %v958
    %1361 = vmatprep.subr.bf16.mxu0 0
    %1362 = vmatpush1.bf16.msra.mxu0 %v961
    %1363 = vmatprep.subr.bf16.mxu0 0
    %1364 = vmatpush1.bf16.msra.mxu0 %v964
    %1365 = vmatprep.subr.bf16.mxu0 0
    %1366 = vmatpush1.bf16.msra.mxu0 %v967
    %1367 = vmatprep.subr.bf16.mxu0 0
    %1368 = vmatpush1.bf16.msra.mxu0 %v970
    %1369 = vmatprep.subr.bf16.mxu0 0
    %1370 = vmatpush1.bf16.msra.mxu0 %v973
    %1371 = vmatprep.subr.bf16.mxu0 0
    %1372 = vmatpush1.bf16.msra.mxu0 %v976
    %1373 = vmatprep.subr.bf16.mxu0 0
    %1374 = vmatpush1.bf16.msra.mxu0 %v979
    %1375 = vmatprep.subr.bf16.mxu0 0
    %1376 = vmatpush1.bf16.msra.mxu0 %v982
    %1377 = vmatprep.mubr.bf16.mxu0 %v195
    %1378 = vmatmul.mubr.bf16.gmra.mrb[0].mxu0 %v194
    %v1379 = vpop.f32.mrb[0].mxu0
    %v1380 = vadd.f32 %v1339, %v1379
    %v1381 = vpop.f32.mrb[0].mxu0
    %v1382 = vpop.f32.mrb[0].mxu0
    %v1383 = vadd.f32 %v1342, %v1382
    %v1384 = vpop.f32.mrb[0].mxu0
    %1385 = vdwg.mxu0
    %1386 = vmatprep.subr.bf16.mxu0 0
    %1387 = vmatpush1.bf16.msra.mxu0 %v985
    %1388 = vmatprep.subr.bf16.mxu0 0
    %1389 = vmatpush1.bf16.msra.mxu0 %v988
    %1390 = vmatprep.subr.bf16.mxu0 0
    %1391 = vmatpush1.bf16.msra.mxu0 %v991
    %1392 = vmatprep.subr.bf16.mxu0 0
    %1393 = vmatpush1.bf16.msra.mxu0 %v994
    %1394 = vmatprep.subr.bf16.mxu0 0
    %1395 = vmatpush1.bf16.msra.mxu0 %v997
    %1396 = vmatprep.subr.bf16.mxu0 0
    %1397 = vmatpush1.bf16.msra.mxu0 %v1000
    %1398 = vmatprep.subr.bf16.mxu0 0
    %1399 = vmatpush1.bf16.msra.mxu0 %v1003
    %1400 = vmatprep.subr.bf16.mxu0 0
    %1401 = vmatpush1.bf16.msra.mxu0 %v1006
    %1402 = vmatprep.subr.bf16.mxu0 0
    %1403 = vmatpush1.bf16.msra.mxu0 %v1009
    %1404 = vmatprep.subr.bf16.mxu0 0
    %1405 = vmatpush1.bf16.msra.mxu0 %v1012
    %1406 = vmatprep.subr.bf16.mxu0 0
    %1407 = vmatpush1.bf16.msra.mxu0 %v1015
    %1408 = vmatprep.subr.bf16.mxu0 0
    %1409 = vmatpush1.bf16.msra.mxu0 %v1018
    %1410 = vmatprep.subr.bf16.mxu0 0
    %1411 = vmatpush1.bf16.msra.mxu0 %v1021
    %1412 = vmatprep.subr.bf16.mxu0 0
    %1413 = vmatpush1.bf16.msra.mxu0 %v1024
    %1414 = vmatprep.subr.bf16.mxu0 0
    %1415 = vmatpush1.bf16.msra.mxu0 %v1027
    %1416 = vmatprep.subr.bf16.mxu0 0
    %1417 = vmatpush1.bf16.msra.mxu0 %v1030
    %1418 = vmatprep.mubr.bf16.mxu0 %v197
    %1419 = vmatmul.mubr.bf16.gmra.mrb[0].mxu0 %v196
    %v1420 = vpop.f32.mrb[0].mxu0
    %v1421 = vadd.f32 %v1380, %v1420
    %v1422 = vpop.f32.mrb[0].mxu0
    %v1423 = vpop.f32.mrb[0].mxu0
    %v1424 = vadd.f32 %v1383, %v1423
    %v1425 = vpop.f32.mrb[0].mxu0
    %1426 = vdwg.mxu0
    %v1427 = vmax.f32 %v1296, 0.0
    %v1428 = vmax.f32 %v1298, 0.0
    %v1429 = vmax.f32 %v1421, 0.0
    %v1430 = vmax.f32 %v1300, 0.0
    %v1431 = vmax.f32 %v1302, 0.0
    %v1432 = vmax.f32 %v1424, 0.0
    %v1433 = vpack.c.bf16 %v1430, %v1427
    %v1434 = vpack.c.bf16 %v1431, %v1428
    %v1435 = vpack.c.bf16 %v1432, %v1429
    %v1436 = vld [vmem:[%s3] sm:$0xff]
    %v1437 = vld [vmem:[%s3 + $0x8] sm:$0xff]
    %v1438 = vld [vmem:[%s3 + $0x10] sm:$0xff]
    %v1439 = vld [vmem:[%s3 + $0x18] sm:$0xff]
    %v1440 = vld [vmem:[%s3 + $0x20] sm:$0xff]
    %v1441 = vld [vmem:[%s3 + $0x28] sm:$0xff]
    %v1442 = vld [vmem:[%s3 + $0x30] sm:$0xff]
    %v1443 = vld [vmem:[%s3 + $0x38] sm:$0xff]
    %v1444 = vld [vmem:[%s3 + $0x40] sm:$0xff]
    %v1445 = vld [vmem:[%s3 + $0x48] sm:$0xff]
    %v1446 = vld [vmem:[%s3 + $0x50] sm:$0xff]
    %v1447 = vld [vmem:[%s3 + $0x58] sm:$0xff]
    %v1448 = vld [vmem:[%s3 + $0x60] sm:$0xff]
    %v1449 = vld [vmem:[%s3 + $0x68] sm:$0xff]
    %v1450 = vld [vmem:[%s3 + $0x70] sm:$0xff]
    %v1451 = vld [vmem:[%s3 + $0x78] sm:$0xff]
    %v1452 = vld [vmem:[%s3 + $0x80] sm:$0xff]
    %v1453 = vld [vmem:[%s3 + $0x88] sm:$0xff]
    %v1454 = vld [vmem:[%s3 + $0x90] sm:$0xff]
    %v1455 = vld [vmem:[%s3 + $0x98] sm:$0xff]
    %v1456 = vld [vmem:[%s3 + $0xa0] sm:$0xff]
    %v1457 = vld [vmem:[%s3 + $0xa8] sm:$0xff]
    %v1458 = vld [vmem:[%s3 + $0xb0] sm:$0xff]
    %v1459 = vld [vmem:[%s3 + $0xb8] sm:$0xff]
    %v1460 = vld [vmem:[%s3 + $0xc0] sm:$0xff]
    %v1461 = vld [vmem:[%s3 + $0xc8] sm:$0xff]
    %v1462 = vld [vmem:[%s3 + $0xd0] sm:$0xff]
    %v1463 = vld [vmem:[%s3 + $0xd8] sm:$0xff]
    %v1464 = vld [vmem:[%s3 + $0xe0] sm:$0xff]
    %v1465 = vld [vmem:[%s3 + $0xe8] sm:$0xff]
    %v1466 = vld [vmem:[%s3 + $0xf0] sm:$0xff]
    %v1467 = vld [vmem:[%s3 + $0xf8] sm:$0xff]
    %v1468 = vld [vmem:[%s3 + $0x100] sm:$0xff]
    %v1469 = vld [vmem:[%s3 + $0x108] sm:$0xff]
    %v1470 = vld [vmem:[%s3 + $0x110] sm:$0xff]
    %v1471 = vld [vmem:[%s3 + $0x118] sm:$0xff]
    %v1472 = vld [vmem:[%s4] sm:$0x3]
    %v1474 = vlaneseq
    %v1475 = vshrl.u32 %v1474, 7
    %v1476 = vsub.s32 0, %v1475
    %v1477 = vrot.slane %v1472, %v1476
    %v1478 = vlaneseq
    %v1479 = vshrl.u32 %v1478, 7
    %v1480 = vsub.s32 1, %v1479
    %v1481 = vrot.slane %v1472, %v1480
    %v1520 = vunpack.c.l.b16 %v1436
    %v1521 = vunpack.c.h.b16 %v1436
    %v1522 = vunpack.c.l.b16 %v1437
    %v1523 = vunpack.c.h.b16 %v1437
    %v1524 = vunpack.c.l.b16 %v1438
    %v1525 = vunpack.c.h.b16 %v1438
    %v1526 = vunpack.c.l.b16 %v1439
    %v1527 = vunpack.c.h.b16 %v1439
    %v1528 = vunpack.c.l.b16 %v1440
    %v1529 = vunpack.c.h.b16 %v1440
    %v1530 = vunpack.c.l.b16 %v1441
    %v1531 = vunpack.c.h.b16 %v1441
    %v1532 = vunpack.c.l.b16 %v1442
    %v1533 = vunpack.c.h.b16 %v1442
    %v1534 = vunpack.c.l.b16 %v1443
    %v1535 = vunpack.c.h.b16 %v1443
    %v1536 = vunpack.c.l.b16 %v1444
    %v1537 = vunpack.c.h.b16 %v1444
    %v1538 = vunpack.c.l.b16 %v1445
    %v1539 = vunpack.c.h.b16 %v1445
    %v1540 = vunpack.c.l.b16 %v1446
    %v1541 = vunpack.c.h.b16 %v1446
    %v1542 = vunpack.c.l.b16 %v1447
    %v1543 = vunpack.c.h.b16 %v1447
    %v1544 = vunpack.c.l.b16 %v1448
    %v1545 = vunpack.c.h.b16 %v1448
    %v1546 = vunpack.c.l.b16 %v1449
    %v1547 = vunpack.c.h.b16 %v1449
    %v1548 = vunpack.c.l.b16 %v1450
    %v1549 = vunpack.c.h.b16 %v1450
    %v1550 = vunpack.c.l.b16 %v1451
    %v1551 = vunpack.c.h.b16 %v1451
    %v1552 = vunpack.c.l.b16 %v1452
    %v1553 = vunpack.c.h.b16 %v1452
    %v1554 = vunpack.c.l.b16 %v1453
    %v1555 = vunpack.c.h.b16 %v1453
    %v1556 = vunpack.c.l.b16 %v1454
    %v1557 = vunpack.c.h.b16 %v1454
    %v1558 = vunpack.c.l.b16 %v1455
    %v1559 = vunpack.c.h.b16 %v1455
    %v1560 = vunpack.c.l.b16 %v1456
    %v1561 = vunpack.c.h.b16 %v1456
    %v1562 = vunpack.c.l.b16 %v1457
    %v1563 = vunpack.c.h.b16 %v1457
    %v1564 = vunpack.c.l.b16 %v1458
    %v1565 = vunpack.c.h.b16 %v1458
    %v1566 = vunpack.c.l.b16 %v1459
    %v1567 = vunpack.c.h.b16 %v1459
    %v1568 = vunpack.c.l.b16 %v1460
    %v1569 = vunpack.c.h.b16 %v1460
    %v1570 = vunpack.c.l.b16 %v1461
    %v1571 = vunpack.c.h.b16 %v1461
    %v1572 = vunpack.c.l.b16 %v1462
    %v1573 = vunpack.c.h.b16 %v1462
    %v1574 = vunpack.c.l.b16 %v1463
    %v1575 = vunpack.c.h.b16 %v1463
    %v1576 = vunpack.c.l.b16 %v1464
    %v1577 = vunpack.c.h.b16 %v1464
    %v1578 = vunpack.c.l.b16 %v1465
    %v1579 = vunpack.c.h.b16 %v1465
    %v1580 = vunpack.c.l.b16 %v1466
    %v1581 = vunpack.c.h.b16 %v1466
    %v1582 = vunpack.c.l.b16 %v1467
    %v1583 = vunpack.c.h.b16 %v1467
    %v1584 = vunpack.c.l.b16 %v1468
    %v1585 = vunpack.c.h.b16 %v1468
    %v1586 = vunpack.c.l.b16 %v1469
    %v1587 = vunpack.c.h.b16 %v1469
    %v1588 = vunpack.c.l.b16 %v1470
    %v1589 = vunpack.c.h.b16 %v1470
    %v1590 = vunpack.c.l.b16 %v1471
    %v1591 = vunpack.c.h.b16 %v1471
    %v1592 = vpack.c.b16 %v1522, %v1520
    %v1593 = vpack.c.b16 %v1523, %v1521
    %v1594 = vpack.c.b16 %v1526, %v1524
    %v1595 = vpack.c.b16 %v1527, %v1525
    %v1596 = vpack.c.b16 %v1530, %v1528
    %v1597 = vpack.c.b16 %v1531, %v1529
    %v1598 = vpack.c.b16 %v1534, %v1532
    %v1599 = vpack.c.b16 %v1535, %v1533
    %v1600 = vpack.c.b16 %v1538, %v1536
    %v1601 = vpack.c.b16 %v1539, %v1537
    %v1602 = vpack.c.b16 %v1542, %v1540
    %v1603 = vpack.c.b16 %v1543, %v1541
    %v1604 = vpack.c.b16 %v1546, %v1544
    %v1605 = vpack.c.b16 %v1547, %v1545
    %v1606 = vpack.c.b16 %v1550, %v1548
    %v1607 = vpack.c.b16 %v1551, %v1549
    %v1608 = vpack.c.b16 %v1554, %v1552
    %v1609 = vpack.c.b16 %v1555, %v1553
    %v1610 = vpack.c.b16 %v1558, %v1556
    %v1611 = vpack.c.b16 %v1559, %v1557
    %v1612 = vpack.c.b16 %v1562, %v1560
    %v1613 = vpack.c.b16 %v1563, %v1561
    %v1614 = vpack.c.b16 %v1566, %v1564
    %v1615 = vpack.c.b16 %v1567, %v1565
    %v1616 = vpack.c.b16 %v1570, %v1568
    %v1617 = vpack.c.b16 %v1571, %v1569
    %v1618 = vpack.c.b16 %v1574, %v1572
    %v1619 = vpack.c.b16 %v1575, %v1573
    %v1620 = vpack.c.b16 %v1578, %v1576
    %v1621 = vpack.c.b16 %v1579, %v1577
    %v1622 = vpack.c.b16 %v1582, %v1580
    %v1623 = vpack.c.b16 %v1583, %v1581
    %v1624 = vpack.c.b16 %v1586, %v1584
    %v1625 = vpack.c.b16 %v1587, %v1585
    %v1626 = vpack.c.b16 %v1590, %v1588
    %v1627 = vpack.c.b16 %v1591, %v1589
    %vm1664 = vcmask 261120
    %v1666 = vsel %vm1664, %v1435, 0
    %1668 = vmatprep.subr.bf16.mxu0 %v1593
    %1669 = vmatpush1.bf16.msra.mxu0 %v1592
    %1670 = vmatprep.subr.bf16.mxu0 %v1595
    %1671 = vmatpush1.bf16.msra.mxu0 %v1594
    %1672 = vmatprep.subr.bf16.mxu0 %v1597
    %1673 = vmatpush1.bf16.msra.mxu0 %v1596
    %1674 = vmatprep.subr.bf16.mxu0 %v1599
    %1675 = vmatpush1.bf16.msra.mxu0 %v1598
    %1676 = vmatprep.subr.bf16.mxu0 %v1601
    %1677 = vmatpush1.bf16.msra.mxu0 %v1600
    %1678 = vmatprep.subr.bf16.mxu0 %v1603
    %1679 = vmatpush1.bf16.msra.mxu0 %v1602
    %1680 = vmatprep.subr.bf16.mxu0 %v1605
    %1681 = vmatpush1.bf16.msra.mxu0 %v1604
    %1682 = vmatprep.subr.bf16.mxu0 %v1607
    %1683 = vmatpush1.bf16.msra.mxu0 %v1606
    %1684 = vmatprep.subr.bf16.mxu0 %v1609
    %1685 = vmatpush1.bf16.msra.mxu0 %v1608
    %1686 = vmatprep.subr.bf16.mxu0 %v1611
    %1687 = vmatpush1.bf16.msra.mxu0 %v1610
    %1688 = vmatprep.subr.bf16.mxu0 %v1613
    %1689 = vmatpush1.bf16.msra.mxu0 %v1612
    %1690 = vmatprep.subr.bf16.mxu0 %v1615
    %1691 = vmatpush1.bf16.msra.mxu0 %v1614
    %1692 = vmatprep.subr.bf16.mxu0 %v1617
    %1693 = vmatpush1.bf16.msra.mxu0 %v1616
    %1694 = vmatprep.subr.bf16.mxu0 %v1619
    %1695 = vmatpush1.bf16.msra.mxu0 %v1618
    %1696 = vmatprep.subr.bf16.mxu0 %v1621
    %1697 = vmatpush1.bf16.msra.mxu0 %v1620
    %1698 = vmatprep.subr.bf16.mxu0 %v1623
    %1699 = vmatpush1.bf16.msra.mxu0 %v1622
    %1700 = vmatprep.mubr.bf16.mxu0 %v1434
    %1701 = vmatmul.mubr.bf16.gmra.mrb[0].mxu0 %v1433
    %v1702 = vpop.f32.mrb[0].mxu0
    %v1703 = vadd.f32 %v1477, %v1702
    %v1704 = vpop.f32.mrb[0].mxu0
    %v1705 = vadd.f32 %v1481, %v1704
    %v1706 = vpop.f32.mrb[0].mxu0
    %v1707 = vadd.f32 %v1477, %v1706
    %v1708 = vpop.f32.mrb[0].mxu0
    %v1709 = vadd.f32 %v1481, %v1708
    %1710 = vdwg.mxu0
    %1711 = vmatprep.subr.bf16.mxu0 %v1625
    %1712 = vmatpush1.bf16.msra.mxu0 %v1624
    %1713 = vmatprep.subr.bf16.mxu0 %v1627
    %1714 = vmatpush1.bf16.msra.mxu0 %v1626
    %1715 = vmatprep.subr.bf16.mxu0 0
    %1716 = vmatpush1.bf16.msra.mxu0 0
    %1717 = vmatprep.subr.bf16.mxu0 0
    %1718 = vmatpush1.bf16.msra.mxu0 0
    %1719 = vmatprep.subr.bf16.mxu0 0
    %1720 = vmatpush1.bf16.msra.mxu0 0
    %1721 = vmatprep.subr.bf16.mxu0 0
    %1722 = vmatpush1.bf16.msra.mxu0 0
    %1723 = vmatprep.subr.bf16.mxu0 0
    %1724 = vmatpush1.bf16.msra.mxu0 0
    %1725 = vmatprep.subr.bf16.mxu0 0
    %1726 = vmatpush1.bf16.msra.mxu0 0
    %1727 = vmatprep.subr.bf16.mxu0 0
    %1728 = vmatpush1.bf16.msra.mxu0 0
    %1729 = vmatprep.subr.bf16.mxu0 0
    %1730 = vmatpush1.bf16.msra.mxu0 0
    %1731 = vmatprep.subr.bf16.mxu0 0
    %1732 = vmatpush1.bf16.msra.mxu0 0
    %1733 = vmatprep.subr.bf16.mxu0 0
    %1734 = vmatpush1.bf16.msra.mxu0 0
    %1735 = vmatprep.subr.bf16.mxu0 0
    %1736 = vmatpush1.bf16.msra.mxu0 0
    %1737 = vmatprep.subr.bf16.mxu0 0
    %1738 = vmatpush1.bf16.msra.mxu0 0
    %1739 = vmatprep.subr.bf16.mxu0 0
    %1740 = vmatpush1.bf16.msra.mxu0 0
    %1741 = vmatprep.subr.bf16.mxu0 0
    %1742 = vmatpush1.bf16.msra.mxu0 0
    %1743 = vmatprep.mubr.bf16.mxu0 0
    %1744 = vmatmul.mubr.bf16.gmra.mrb[0].mxu0 %v1666
    %v1745 = vpop.f32.mrb[0].mxu0
    %v1746 = vadd.f32 %v1703, %v1745
    %v1747 = vpop.f32.mrb[0].mxu0
    %v1748 = vadd.f32 %v1705, %v1747
    %v1749 = vpop.f32.mrb[0].mxu0
    %v1750 = vadd.f32 %v1707, %v1749
    %v1751 = vpop.f32.mrb[0].mxu0
    %v1752 = vadd.f32 %v1709, %v1751
    %1753 = vdwg.mxu0
    %v1754 = vmax.f32 %v1746, 0.0
    %v1755 = vmax.f32 %v1748, 0.0
    %v1756 = vmax.f32 %v1750, 0.0
    %v1757 = vmax.f32 %v1752, 0.0
    %v1758 = vpack.c.bf16 %v1756, %v1754
    %v1759 = vpack.c.bf16 %v1757, %v1755
    %v1760 = vld [vmem:[%s5] sm:$0xf]
    %v1761 = vld [vmem:[%s5 + $0x4] sm:$0xf]
    %v1762 = vld [vmem:[%s5 + $0x8] sm:$0xf]
    %v1763 = vld [vmem:[%s5 + $0xc] sm:$0xf]
    %v1764 = vld [vmem:[%s5 + $0x10] sm:$0xf]
    %v1765 = vld [vmem:[%s5 + $0x14] sm:$0xf]
    %v1766 = vld [vmem:[%s5 + $0x18] sm:$0xf]
    %v1767 = vld [vmem:[%s5 + $0x1c] sm:$0xf]
    %v1768 = vld [vmem:[%s5 + $0x20] sm:$0xf]
    %v1769 = vld [vmem:[%s5 + $0x24] sm:$0xf]
    %v1770 = vld [vmem:[%s5 + $0x28] sm:$0xf]
    %v1771 = vld [vmem:[%s5 + $0x2c] sm:$0xf]
    %v1772 = vld [vmem:[%s5 + $0x30] sm:$0xf]
    %v1773 = vld [vmem:[%s5 + $0x34] sm:$0xf]
    %v1774 = vld [vmem:[%s5 + $0x38] sm:$0xf]
    %v1775 = vld [vmem:[%s5 + $0x3c] sm:$0xf]
    %v1776 = vld [vmem:[%s5 + $0x40] sm:$0xf]
    %v1777 = vld [vmem:[%s5 + $0x44] sm:$0xf]
    %v1778 = vld [vmem:[%s5 + $0x48] sm:$0xf]
    %v1779 = vld [vmem:[%s5 + $0x4c] sm:$0xf]
    %v1780 = vld [vmem:[%s5 + $0x50] sm:$0xf]
    %v1781 = vld [vmem:[%s5 + $0x54] sm:$0xf]
    %v1782 = vld [vmem:[%s5 + $0x58] sm:$0xf]
    %v1783 = vld [vmem:[%s5 + $0x5c] sm:$0xf]
    %v1784 = vld [vmem:[%s5 + $0x60] sm:$0xf]
    %v1785 = vld [vmem:[%s5 + $0x64] sm:$0xf]
    %v1786 = vld [vmem:[%s5 + $0x68] sm:$0xf]
    %v1787 = vld [vmem:[%s5 + $0x6c] sm:$0xf]
    %v1788 = vld [vmem:[%s5 + $0x70] sm:$0xf]
    %v1789 = vld [vmem:[%s5 + $0x74] sm:$0xf]
    %v1790 = vld [vmem:[%s5 + $0x78] sm:$0xf]
    %v1791 = vld [vmem:[%s5 + $0x7c] sm:$0xf]
    %v1792 = vld [vmem:[%s6] sm:$0x1]
    %v1794 = vlaneseq
    %v1795 = vshrl.u32 %v1794, 7
    %v1796 = vsub.s32 0, %v1795
    %v1797 = vrot.slane %v1792, %v1796
    %v1831 = vunpack.c.l.b16 %v1760
    %v1832 = vunpack.c.l.b16 %v1761
    %v1833 = vunpack.c.l.b16 %v1762
    %v1834 = vunpack.c.l.b16 %v1763
    %v1835 = vunpack.c.l.b16 %v1764
    %v1836 = vunpack.c.l.b16 %v1765
    %v1837 = vunpack.c.l.b16 %v1766
    %v1838 = vunpack.c.l.b16 %v1767
    %v1839 = vunpack.c.l.b16 %v1768
    %v1840 = vunpack.c.l.b16 %v1769
    %v1841 = vunpack.c.l.b16 %v1770
    %v1842 = vunpack.c.l.b16 %v1771
    %v1843 = vunpack.c.l.b16 %v1772
    %v1844 = vunpack.c.l.b16 %v1773
    %v1845 = vunpack.c.l.b16 %v1774
    %v1846 = vunpack.c.l.b16 %v1775
    %v1847 = vunpack.c.l.b16 %v1776
    %v1848 = vunpack.c.l.b16 %v1777
    %v1849 = vunpack.c.l.b16 %v1778
    %v1850 = vunpack.c.l.b16 %v1779
    %v1851 = vunpack.c.l.b16 %v1780
    %v1852 = vunpack.c.l.b16 %v1781
    %v1853 = vunpack.c.l.b16 %v1782
    %v1854 = vunpack.c.l.b16 %v1783
    %v1855 = vunpack.c.l.b16 %v1784
    %v1856 = vunpack.c.l.b16 %v1785
    %v1857 = vunpack.c.l.b16 %v1786
    %v1858 = vunpack.c.l.b16 %v1787
    %v1859 = vunpack.c.l.b16 %v1788
    %v1860 = vunpack.c.l.b16 %v1789
    %v1861 = vunpack.c.l.b16 %v1790
    %v1862 = vunpack.c.l.b16 %v1791
    %v1863 = vpack.c.b16 %v1832, %v1831
    %v1864 = vpack.c.b16 %v1834, %v1833
    %v1865 = vpack.c.b16 %v1836, %v1835
    %v1866 = vpack.c.b16 %v1838, %v1837
    %v1867 = vpack.c.b16 %v1840, %v1839
    %v1868 = vpack.c.b16 %v1842, %v1841
    %v1869 = vpack.c.b16 %v1844, %v1843
    %v1870 = vpack.c.b16 %v1846, %v1845
    %v1871 = vpack.c.b16 %v1848, %v1847
    %v1872 = vpack.c.b16 %v1850, %v1849
    %v1873 = vpack.c.b16 %v1852, %v1851
    %v1874 = vpack.c.b16 %v1854, %v1853
    %v1875 = vpack.c.b16 %v1856, %v1855
    %v1876 = vpack.c.b16 %v1858, %v1857
    %v1877 = vpack.c.b16 %v1860, %v1859
    %v1878 = vpack.c.b16 %v1862, %v1861
    %1895 = vmatprep.subr.bf16.mxu0 0
    %1896 = vmatpush1.bf16.msra.mxu0 %v1863
    %1897 = vmatprep.subr.bf16.mxu0 0
    %1898 = vmatpush1.bf16.msra.mxu0 %v1864
    %1899 = vmatprep.subr.bf16.mxu0 0
    %1900 = vmatpush1.bf16.msra.mxu0 %v1865
    %1901 = vmatprep.subr.bf16.mxu0 0
    %1902 = vmatpush1.bf16.msra.mxu0 %v1866
    %1903 = vmatprep.subr.bf16.mxu0 0
    %1904 = vmatpush1.bf16.msra.mxu0 %v1867
    %1905 = vmatprep.subr.bf16.mxu0 0
    %1906 = vmatpush1.bf16.msra.mxu0 %v1868
    %1907 = vmatprep.subr.bf16.mxu0 0
    %1908 = vmatpush1.bf16.msra.mxu0 %v1869
    %1909 = vmatprep.subr.bf16.mxu0 0
    %1910 = vmatpush1.bf16.msra.mxu0 %v1870
    %1911 = vmatprep.subr.bf16.mxu0 0
    %1912 = vmatpush1.bf16.msra.mxu0 %v1871
    %1913 = vmatprep.subr.bf16.mxu0 0
    %1914 = vmatpush1.bf16.msra.mxu0 %v1872
    %1915 = vmatprep.subr.bf16.mxu0 0
    %1916 = vmatpush1.bf16.msra.mxu0 %v1873
    %1917 = vmatprep.subr.bf16.mxu0 0
    %1918 = vmatpush1.bf16.msra.mxu0 %v1874
    %1919 = vmatprep.subr.bf16.mxu0 0
    %1920 = vmatpush1.bf16.msra.mxu0 %v1875
    %1921 = vmatprep.subr.bf16.mxu0 0
    %1922 = vmatpush1.bf16.msra.mxu0 %v1876
    %1923 = vmatprep.subr.bf16.mxu0 0
    %1924 = vmatpush1.bf16.msra.mxu0 %v1877
    %1925 = vmatprep.subr.bf16.mxu0 0
    %1926 = vmatpush1.bf16.msra.mxu0 %v1878
    %1927 = vmatprep.mubr.bf16.mxu0 %v1759
    %1928 = vmatmul.mubr.bf16.gmra.mrb[0].mxu0 %v1758
    %v1929 = vpop.f32.mrb[0].mxu0
    %v1930 = vadd.f32 %v1797, %v1929
    %v1931 = vpop.f32.mrb[0].mxu0
    %v1932 = vpop.f32.mrb[0].mxu0
    %v1933 = vadd.f32 %v1797, %v1932
    %v1934 = vpop.f32.mrb[0].mxu0
    %1935 = vdwg.mxu0
    %v1936 = vmax.f32 %v1930, 0.0
    %v1937 = vmax.f32 %v1933, 0.0
    %v1938 = vpack.c.bf16 %v1937, %v1936
    %v1939 = vld [vmem:[%s7] sm:$0xf]
    %v1940 = vld [vmem:[%s7 + $0x4] sm:$0xf]
    %v1941 = vld [vmem:[%s7 + $0x8] sm:$0xf]
    %v1942 = vld [vmem:[%s7 + $0xc] sm:$0xf]
    %v1943 = vld [vmem:[%s7 + $0x10] sm:$0xf]
    %v1944 = vld [vmem:[%s7 + $0x14] sm:$0xf]
    %v1945 = vld [vmem:[%s7 + $0x18] sm:$0xf]
    %v1946 = vld [vmem:[%s7 + $0x1c] sm:$0xf]
    %v1947 = vld [vmem:[%s7 + $0x20] sm:$0xf]
    %v1948 = vld [vmem:[%s7 + $0x24] sm:$0xf]
    %v1949 = vld [vmem:[%s7 + $0x28] sm:$0xf]
    %v1950 = vld [vmem:[%s7 + $0x2c] sm:$0xf]
    %v1951 = vld [vmem:[%s7 + $0x30] sm:$0xf]
    %v1952 = vld [vmem:[%s7 + $0x34] sm:$0xf]
    %v1953 = vld [vmem:[%s7 + $0x38] sm:$0xf]
    %v1954 = vld [vmem:[%s7 + $0x3c] sm:$0xf]
    %v1955 = vld [vmem:[%s8] sm:$0x1]
    %v1957 = vlaneseq
    %v1958 = vshrl.u32 %v1957, 7
    %v1959 = vsub.s32 0, %v1958
    %v1960 = vrot.slane %v1955, %v1959
    %v1978 = vunpack.c.l.b16 %v1939
    %v1979 = vunpack.c.l.b16 %v1940
    %v1980 = vunpack.c.l.b16 %v1941
    %v1981 = vunpack.c.l.b16 %v1942
    %v1982 = vunpack.c.l.b16 %v1943
    %v1983 = vunpack.c.l.b16 %v1944
    %v1984 = vunpack.c.l.b16 %v1945
    %v1985 = vunpack.c.l.b16 %v1946
    %v1986 = vunpack.c.l.b16 %v1947
    %v1987 = vunpack.c.l.b16 %v1948
    %v1988 = vunpack.c.l.b16 %v1949
    %v1989 = vunpack.c.l.b16 %v1950
    %v1990 = vunpack.c.l.b16 %v1951
    %v1991 = vunpack.c.l.b16 %v1952
    %v1992 = vunpack.c.l.b16 %v1953
    %v1993 = vunpack.c.l.b16 %v1954
    %v1994 = vpack.c.b16 %v1979, %v1978
    %v1995 = vpack.c.b16 %v1981, %v1980
    %v1996 = vpack.c.b16 %v1983, %v1982
    %v1997 = vpack.c.b16 %v1985, %v1984
    %v1998 = vpack.c.b16 %v1987, %v1986
    %v1999 = vpack.c.b16 %v1989, %v1988
    %v2000 = vpack.c.b16 %v1991, %v1990
    %v2001 = vpack.c.b16 %v1993, %v1992
    %2010 = vmatprep.subr.bf16.mxu0 0
    %2011 = vmatpush1.bf16.msra.mxu0 %v1994
    %2012 = vmatprep.subr.bf16.mxu0 0
    %2013 = vmatpush1.bf16.msra.mxu0 %v1995
    %2014 = vmatprep.subr.bf16.mxu0 0
    %2015 = vmatpush1.bf16.msra.mxu0 %v1996
    %2016 = vmatprep.subr.bf16.mxu0 0
    %2017 = vmatpush1.bf16.msra.mxu0 %v1997
    %2018 = vmatprep.subr.bf16.mxu0 0
    %2019 = vmatpush1.bf16.msra.mxu0 %v1998
    %2020 = vmatprep.subr.bf16.mxu0 0
    %2021 = vmatpush1.bf16.msra.mxu0 %v1999
    %2022 = vmatprep.subr.bf16.mxu0 0
    %2023 = vmatpush1.bf16.msra.mxu0 %v2000
    %2024 = vmatprep.subr.bf16.mxu0 0
    %2025 = vmatpush1.bf16.msra.mxu0 %v2001
    %2026 = vmatprep.subr.bf16.mxu0 0
    %2027 = vmatpush1.bf16.msra.mxu0 0
    %2028 = vmatprep.subr.bf16.mxu0 0
    %2029 = vmatpush1.bf16.msra.mxu0 0
    %2030 = vmatprep.subr.bf16.mxu0 0
    %2031 = vmatpush1.bf16.msra.mxu0 0
    %2032 = vmatprep.subr.bf16.mxu0 0
    %2033 = vmatpush1.bf16.msra.mxu0 0
    %2034 = vmatprep.subr.bf16.mxu0 0
    %2035 = vmatpush1.bf16.msra.mxu0 0
    %2036 = vmatprep.subr.bf16.mxu0 0
    %2037 = vmatpush1.bf16.msra.mxu0 0
    %2038 = vmatprep.subr.bf16.mxu0 0
    %2039 = vmatpush1.bf16.msra.mxu0 0
    %2040 = vmatprep.subr.bf16.mxu0 0
    %2041 = vmatpush1.bf16.msra.mxu0 0
    %2042 = vmatprep.mubr.bf16.mxu0 0
    %2043 = vmatmul.mubr.bf16.gmra.mrb[0].mxu0 %v1938
    %v2044 = vpop.f32.mrb[0].mxu0
    %v2045 = vadd.f32 %v1960, %v2044
    %v2046 = vpop.f32.mrb[0].mxu0
    %v2047 = vpop.f32.mrb[0].mxu0
    %v2048 = vadd.f32 %v1960, %v2047
    %v2049 = vpop.f32.mrb[0].mxu0
    %2050 = vdwg.mxu0
    %v2051 = vmax.f32 %v2045, 0.0
    %v2052 = vmax.f32 %v2048, 0.0
    %v2053 = vpack.c.bf16 %v2052, %v2051
    %v2054 = vld [vmem:[%s9] sm:$0xf]
    %v2055 = vld [vmem:[%s9 + $0x4] sm:$0xf]
    %v2056 = vld [vmem:[%s9 + $0x8] sm:$0xf]
    %v2057 = vld [vmem:[%s9 + $0xc] sm:$0xf]
    %v2058 = vld [vmem:[%s9 + $0x10] sm:$0xf]
    %v2059 = vld [vmem:[%s9 + $0x14] sm:$0xf]
    %v2060 = vld [vmem:[%s9 + $0x18] sm:$0xf]
    %v2061 = vld [vmem:[%s9 + $0x1c] sm:$0xf]
    %v2062 = vld [vmem:[%s10] sm:$0x1]
    %v2064 = vlaneseq
    %v2065 = vshrl.u32 %v2064, 7
    %v2066 = vsub.s32 0, %v2065
    %v2067 = vrot.slane %v2062, %v2066
    %v2077 = vunpack.c.l.b16 %v2054
    %v2078 = vunpack.c.l.b16 %v2055
    %v2079 = vunpack.c.l.b16 %v2056
    %v2080 = vunpack.c.l.b16 %v2057
    %v2081 = vunpack.c.l.b16 %v2058
    %v2082 = vunpack.c.l.b16 %v2059
    %v2083 = vunpack.c.l.b16 %v2060
    %v2084 = vunpack.c.l.b16 %v2061
    %v2085 = vpack.c.b16 %v2078, %v2077
    %v2086 = vpack.c.b16 %v2080, %v2079
    %v2087 = vpack.c.b16 %v2082, %v2081
    %v2088 = vpack.c.b16 %v2084, %v2083
    %vm2093 = vcmask 523264
    %v2095 = vsel %vm2093, %v2053, 0
    %2097 = vmatprep.subr.bf16.mxu0 0
    %2098 = vmatpush1.bf16.msra.mxu0 %v2085
    %2099 = vmatprep.subr.bf16.mxu0 0
    %2100 = vmatpush1.bf16.msra.mxu0 %v2086
    %2101 = vmatprep.subr.bf16.mxu0 0
    %2102 = vmatpush1.bf16.msra.mxu0 %v2087
    %2103 = vmatprep.subr.bf16.mxu0 0
    %2104 = vmatpush1.bf16.msra.mxu0 %v2088
    %2105 = vmatprep.subr.bf16.mxu0 0
    %2106 = vmatpush1.bf16.msra.mxu0 0
    %2107 = vmatprep.subr.bf16.mxu0 0
    %2108 = vmatpush1.bf16.msra.mxu0 0
    %2109 = vmatprep.subr.bf16.mxu0 0
    %2110 = vmatpush1.bf16.msra.mxu0 0
    %2111 = vmatprep.subr.bf16.mxu0 0
    %2112 = vmatpush1.bf16.msra.mxu0 0
    %2113 = vmatprep.subr.bf16.mxu0 0
    %2114 = vmatpush1.bf16.msra.mxu0 0
    %2115 = vmatprep.subr.bf16.mxu0 0
    %2116 = vmatpush1.bf16.msra.mxu0 0
    %2117 = vmatprep.subr.bf16.mxu0 0
    %2118 = vmatpush1.bf16.msra.mxu0 0
    %2119 = vmatprep.subr.bf16.mxu0 0
    %2120 = vmatpush1.bf16.msra.mxu0 0
    %2121 = vmatprep.subr.bf16.mxu0 0
    %2122 = vmatpush1.bf16.msra.mxu0 0
    %2123 = vmatprep.subr.bf16.mxu0 0
    %2124 = vmatpush1.bf16.msra.mxu0 0
    %2125 = vmatprep.subr.bf16.mxu0 0
    %2126 = vmatpush1.bf16.msra.mxu0 0
    %2127 = vmatprep.subr.bf16.mxu0 0
    %2128 = vmatpush1.bf16.msra.mxu0 0
    %2129 = vmatprep.mubr.bf16.mxu0 0
    %2130 = vmatmul.mubr.bf16.gmra.mrb[0].mxu0 %v2095
    %v2131 = vpop.f32.mrb[0].mxu0
    %v2132 = vadd.f32 %v2067, %v2131
    %v2133 = vpop.f32.mrb[0].mxu0
    %v2134 = vpop.f32.mrb[0].mxu0
    %v2135 = vadd.f32 %v2067, %v2134
    %v2136 = vpop.f32.mrb[0].mxu0
    %2137 = vdwg.mxu0
    %v2138 = vsub.f32 %v2132, %v2132
    %v2139 = vsub.f32 %v2135, %v2135
    %v2140 = vmul.f32 %v2138, 1.442695
    %v2141 = vpow.pop %v2140
    %v2142 = vmul.f32 %v2139, 1.442695
    %v2143 = vpow.pop %v2142
    %v2144 = vpack.c.bf16 %v2143, %v2141
    %v2146 = vcombine.high %v2144, %v2144
    %v2148 = vunpack.c.l.s4 1966171168
    %v2149 = vunpack.c.0.s8 %v2148
    %v2150 = vlaneseq
    %v2151 = vshrl.u32 %v2150, 7
    %v2152 = vsub.s32 %v2149, %v2151
    %v2153 = vrot.slane %v2144, %v2152
    %v2155 = vunpack.c.l.s4 1966171168
    %v2156 = vunpack.c.0.s8 %v2155
    %v2157 = vlaneseq
    %v2158 = vshrl.u32 %v2157, 7
    %v2159 = vsub.s32 %v2156, %v2158
    %v2160 = vrot.slane %v2146, %v2159
    %v2161 = vcombine.high %v2153, %v2153
    %v2162 = vcombine.high %v2160, %v2160
    %v2164 = vunpack.c.l.s4 1966171168
    %v2165 = vunpack.c.0.s8 %v2164
    %v2166 = vlaneseq
    %v2167 = vshrl.u32 %v2166, 7
    %v2168 = vsub.s32 %v2165, %v2167
    %v2169 = vrot.slane %v2153, %v2168
    %v2171 = vunpack.c.l.s4 1966171168
    %v2172 = vunpack.c.0.s8 %v2171
    %v2173 = vlaneseq
    %v2174 = vshrl.u32 %v2173, 7
    %v2175 = vsub.s32 %v2172, %v2174
    %v2176 = vrot.slane %v2160, %v2175
    %v2178 = vunpack.c.l.s4 1966171168
    %v2179 = vunpack.c.0.s8 %v2178
    %v2180 = vlaneseq
    %v2181 = vshrl.u32 %v2180, 7
    %v2182 = vsub.s32 %v2179, %v2181
    %v2183 = vrot.slane %v2161, %v2182
    %v2185 = vunpack.c.l.s4 1966171168
    %v2186 = vunpack.c.0.s8 %v2185
    %v2187 = vlaneseq
    %v2188 = vshrl.u32 %v2187, 7
    %v2189 = vsub.s32 %v2186, %v2188
    %v2190 = vrot.slane %v2162, %v2189
    %v2191 = vcombine.high %v2169, %v2169
    %v2192 = vcombine.high %v2176, %v2176
    %v2193 = vcombine.high %v2183, %v2183
    %v2194 = vcombine.high %v2190, %v2190
    %2203 = vst [vmem:[#allocation2] sm:$0x1] %v2169
    %2204 = vst [vmem:[#allocation2 + $0x1] sm:$0x1] %v2183
    %2205 = vst [vmem:[#allocation2 + $0x2] sm:$0x1] %v2191
    %2206 = vst [vmem:[#allocation2 + $0x3] sm:$0x1] %v2193
    %2207 = vst [vmem:[#allocation2 + $0x4] sm:$0x1] %v2176
    %2208 = vst [vmem:[#allocation2 + $0x5] sm:$0x1] %v2190
    %2209 = vst [vmem:[#allocation2 + $0x6] sm:$0x1] %v2192
    %2210 = vst [vmem:[#allocation2 + $0x7] sm:$0x1] %v2194
    // Predicated region
    $region46: #{tpu_custom_call.1} parent=1 // pred_check
      _
    $region47: #{tpu_custom_call.1} parent=1 // pred_check_branch
      %2212 = sbr.rel (0) target = $region49
    $region48: #{tpu_custom_call.1} parent=1 // pred_region
      %s2214 = ssub.s32 128, 16
      %2215 = vsyncadd [#allocation3], %s2214
      %s2216 = sshll.u32 [#allocation2], 4
      %s2217 = int_to_ptr.vmem [resolvable:$true] %s2216
      %2222 = dma.vmem_to_hbm [thread:$0]  %s2217, 16, %s11, [#allocation3], 16, 16, 1
    $region49: #{tpu_custom_call.1} parent=1 // pred_fallthru
      _
    // Predicated region
    $region50: #{tpu_custom_call.1} parent=1 // pred_check
      _
    $region51: #{tpu_custom_call.1} parent=1 // pred_check_branch
      %2224 = sbr.rel (0) target = $region53
    $region52: #{tpu_custom_call.1} parent=1 // pred_region
      %2225 = dma.done [#allocation3], 128
    $region53: #{tpu_custom_call.1} parent=1 // pred_fallthru
      _
    %2226 = vsyncpa [#allocation3], 1

</llo_original>
